<compile_context>
chip_gen: v6e
topology: v6e:2x2x1
jax: 0.10.0
libtpu: 0.0.40
codegen_flags: <defaults>
</compile_context>

<pallas_src>
import jax
import jax.numpy as jnp
from jax.experimental import pallas as pl
from jax.experimental.pallas import tpu as pltpu

LATENT_DIM = 20
HIDDEN_DIM = 400
OUTPUT_DIM = 784  # 28*28 MNIST

_DEFAULT_MAX_BLOCK_B = 1024  # row tile cap (tunable); keeps VMEM modest on v7x too


def _round_up(x, m):
    return ((x + m - 1) // m) * m


def _choose_blocking(B, max_block_b, min_blocks=2):
    """Pick (block_b, n_blocks, B_pad).

    - block_b <= max_block_b, multiple of 8 (sublane).
    - padding is balanced across blocks (bounded by <1 sublane group per block).
    - when B is big enough, use an even number of >=2 blocks so the 'parallel'
      batch axis shards across both TensorCores on v7x.
    """
    n_blocks = pl.cdiv(B, max_block_b)
    if B >= min_blocks * 8:
        n_blocks = max(n_blocks, min_blocks)
    if n_blocks > 1:
        n_blocks = 2 * pl.cdiv(n_blocks, 2)  # even block count for megacore balance
    block_b = _round_up(pl.cdiv(B, n_blocks), 8)
    B_pad = n_blocks * block_b
    return block_b, n_blocks, B_pad


def _decoder_kernel(z_ref, w1_ref, b1_ref, w2_ref, b2_ref, o_ref):
    # fc1 + relu (MXU dot in weight dtype, f32 accumulate, f32 elementwise).
    w1 = w1_ref[...]
    h = jnp.dot(z_ref[...].astype(w1.dtype), w1, preferred_element_type=jnp.float32)
    h = jnp.maximum(h + b1_ref[...], 0.0)          # (block_b, hidden) + (1, hidden)
    # fc2 + sigmoid.
    w2 = w2_ref[...]
    logits = jnp.dot(h.astype(w2.dtype), w2, preferred_element_type=jnp.float32)
    logits = logits + b2_ref[...]                  # (block_b, output) + (1, output)
    # sigmoid(x) = 0.5*(tanh(x/2)+1): single EUP op per vreg (vs exp + divide).
    # TODO(synk): on v6e/v7x the tanh + store could run in bf16 (bf16 EUP/VPU)
    # when out_dtype is bf16; kept f32 here so v5e (no bf16 VPU/EUP) stays clean.
    x_hat = 0.5 * (jnp.tanh(0.5 * logits) + 1.0)
    o_ref[...] = x_hat.astype(o_ref.dtype)


def prepare_params(w1, b1, w2, b2, param_dtype=jnp.bfloat16):
    """One-time parameter prep (hoisted out of the forward hot path).

    Inputs are in PyTorch nn.Linear layout:
      w1: (hidden, latent), b1: (hidden,), w2: (output, hidden), b2: (output,)
    Returns (w1_t, b1_2d, w2_t, b2_2d): weights transposed to (in, out) and cast
    to `param_dtype` (bf16 recommended on ALL generations - the MXU is bf16
    native on v5e/v6e/v7x and it halves weight DMA).  Use param_dtype=f32 for
    exact PyTorch parity.  Biases stay f32 so elementwise math is f32 everywhere.
    """
    w1_t = jnp.transpose(w1).astype(param_dtype)   # (latent, hidden)
    w2_t = jnp.transpose(w2).astype(param_dtype)   # (hidden, output)
    b1_2d = b1.reshape(1, -1).astype(jnp.float32)  # (1, hidden)
    b2_2d = b2.reshape(1, -1).astype(jnp.float32)  # (1, output)
    return w1_t, b1_2d, w2_t, b2_2d


def decoder_forward(z, w1_t, b1_2d, w2_t, b2_2d, *,
                    out_dtype=jnp.float32, max_block_b=_DEFAULT_MAX_BLOCK_B):
    """z: (B, latent) f32.  Params as returned by prepare_params.

    out_dtype=jnp.bfloat16 halves the output HBM writeback (the large-batch
    bottleneck on v6e/v7x) when the consumer tolerates bf16 outputs.
    """
    B = z.shape[0]
    block_b, n_blocks, B_pad = _choose_blocking(B, max_block_b)
    if B_pad != B:
        z = jnp.pad(z, ((0, B_pad - B), (0, 0)))

    out = pl.pallas_call(
        _decoder_kernel,
        out_shape=jax.ShapeDtypeStruct((B_pad, OUTPUT_DIM), out_dtype),
        grid_spec=pltpu.PrefetchScalarGridSpec(
            num_scalar_prefetch=0,
            grid=(n_blocks,),
            in_specs=[
                # Batch-tiled activations.
                pl.BlockSpec((block_b, LATENT_DIM), lambda i: (i, 0)),
                # Weights / biases stay VMEM-resident across grid steps.
                pl.BlockSpec((LATENT_DIM, HIDDEN_DIM), lambda i: (0, 0)),
                pl.BlockSpec((1, HIDDEN_DIM), lambda i: (0, 0)),
                pl.BlockSpec((HIDDEN_DIM, OUTPUT_DIM), lambda i: (0, 0)),
                pl.BlockSpec((1, OUTPUT_DIM), lambda i: (0, 0)),
            ],
            out_specs=pl.BlockSpec((block_b, OUTPUT_DIM), lambda i: (i, 0)),
        ),
        compiler_params=pltpu.CompilerParams(
            dimension_semantics=("parallel",),
            # Covers block_b=1024 f32 output tiles on v5e's 16 MiB default scoped
            # limit; comfortably below v7x's 64 MiB physical VMEM.
            vmem_limit_bytes=48 * 1024 * 1024,
        ),
    )(z, w1_t, b1_2d, w2_t, b2_2d)

    return out[:B] if B_pad != B else out


def init_params(key):
    """Deterministic init mimicking nn.Linear's U(-1/sqrt(fan_in), 1/sqrt(fan_in))."""
    k1, k2, k3, k4 = jax.random.split(key, 4)
    lim1 = 1.0 / jnp.sqrt(jnp.float32(LATENT_DIM))
    lim2 = 1.0 / jnp.sqrt(jnp.float32(HIDDEN_DIM))
    w1 = jax.random.uniform(k1, (HIDDEN_DIM, LATENT_DIM), jnp.float32, -lim1, lim1)
    b1 = jax.random.uniform(k2, (HIDDEN_DIM,), jnp.float32, -lim1, lim1)
    w2 = jax.random.uniform(k3, (OUTPUT_DIM, HIDDEN_DIM), jnp.float32, -lim2, lim2)
    b2 = jax.random.uniform(k4, (OUTPUT_DIM,), jnp.float32, -lim2, lim2)
    return w1, b1, w2, b2


def reference_forward(z, w1, b1, w2, b2):
    h = jnp.maximum(z @ w1.T + b1, 0.0)
    return jax.nn.sigmoid(h @ w2.T + b2)


if __name__ == "__main__":
    key = jax.random.PRNGKey(0)
    kp, kz = jax.random.split(key)
    w1, b1, w2, b2 = init_params(kp)

    # --- Small batch, f32 weights + f32 output: exact semantics vs reference. ---
    B = 8
    z = jax.random.normal(kz, (B, LATENT_DIM), jnp.float32)
    params_f32 = prepare_params(w1, b1, w2, b2, param_dtype=jnp.float32)
    x_hat = jax.block_until_ready(decoder_forward(z, *params_f32))
    ref = reference_forward(z, w1, b1, w2, b2)
    assert x_hat.shape == (B, OUTPUT_DIM), x_hat.shape
    assert jnp.allclose(x_hat, ref, atol=1e-5, rtol=1e-5), "f32 mismatch vs reference"
    assert bool(jnp.all((x_hat >= 0.0) & (x_hat <= 1.0))), "sigmoid range violated"

    # --- bf16-weight fast path (recommended on all generations): loose tolerance. ---
    params_bf16 = prepare_params(w1, b1, w2, b2, param_dtype=jnp.bfloat16)
    x_hat_bf16 = jax.block_until_ready(decoder_forward(z, *params_bf16))
    assert jnp.allclose(x_hat_bf16, ref, atol=3e-2, rtol=3e-2), "bf16-weight mismatch"
    assert bool(jnp.all((x_hat_bf16 >= 0.0) & (x_hat_bf16 <= 1.0))), "range violated"

    # --- bf16 output store (write-bound fast path): loose tolerance. ---
    x_hat_bo = jax.block_until_ready(
        decoder_forward(z, *params_f32, out_dtype=jnp.bfloat16))
    assert x_hat_bo.dtype == jnp.bfloat16
    assert jnp.allclose(x_hat_bo.astype(jnp.float32), ref, atol=1e-2, rtol=1e-2), \
        "bf16-output mismatch"

    # --- Larger, awkward batch: exercises balanced tiling + padding + 2-block grid. ---
    B2 = 1000  # -> n_blocks=2, block_b=504, padded to 1008 (only 8 garbage rows)
    z2 = jax.random.normal(jax.random.PRNGKey(2), (B2, LATENT_DIM), jnp.float32)
    out2 = jax.block_until_ready(decoder_forward(z2, *params_f32))
    ref2 = reference_forward(z2, w1, b1, w2, b2)
    assert out2.shape == (B2, OUTPUT_DIM), out2.shape
    assert jnp.allclose(out2, ref2, atol=1e-5, rtol=1e-5), "tiled f32 mismatch"

    print("KERNEL_OK")
</pallas_src>

<mosaic_0001>
module attributes {stable_mosaic.version = 11 : i64} {
  func.func @_decoder_kernel(%arg0: i32, %arg1: memref<8x20xf32, #tpu.memory_space<vmem>>, %arg2: memref<20x400xf32, #tpu.memory_space<vmem>>, %arg3: memref<1x400xf32, #tpu.memory_space<vmem>>, %arg4: memref<400x784xf32, #tpu.memory_space<vmem>>, %arg5: memref<1x784xf32, #tpu.memory_space<vmem>>, %arg6: memref<8x784xf32, #tpu.memory_space<vmem>>) attributes {dimension_semantics = [#tpu.dimension_semantics<parallel>], iteration_bounds = array<i64: 1>, scalar_prefetch = 0 : i64, scratch_operands = 0 : i64, tpu.core_type = #tpu.core_type<tc>, window_params = [{transform_indices = @transform_0, window_bounds = array<i64: 8, 20>}, {pipeline_mode = #tpu.pipeline_mode<synchronous>, transform_indices = @transform_1, window_bounds = array<i64: 20, 400>}, {pipeline_mode = #tpu.pipeline_mode<synchronous>, transform_indices = @transform_2, window_bounds = array<i64: 1, 400>}, {pipeline_mode = #tpu.pipeline_mode<synchronous>, transform_indices = @transform_3, window_bounds = array<i64: 400, 784>}, {pipeline_mode = #tpu.pipeline_mode<synchronous>, transform_indices = @transform_4, window_bounds = array<i64: 1, 784>}, {transform_indices = @transform_5, window_bounds = array<i64: 8, 784>}]} {
    %c0 = arith.constant 0 : index
    %c0_0 = arith.constant 0 : index
    %0 = vector.load %arg2[%c0, %c0_0] : memref<20x400xf32, #tpu.memory_space<vmem>>, vector<20x400xf32>
    %c0_1 = arith.constant 0 : index
    %c0_2 = arith.constant 0 : index
    %1 = vector.load %arg1[%c0_1, %c0_2] : memref<8x20xf32, #tpu.memory_space<vmem>>, vector<8x20xf32>
    %cst = arith.constant dense<0.000000e+00> : vector<8x400xf32>
    %2 = tpu.matmul %1, %0, %cst {dimension_numbers = #tpu.dot_dimension_numbers<[1], [0], [0], [1], [0, 0, 1, 1], [], []>} : vector<8x20xf32>, vector<20x400xf32>, vector<8x400xf32> -> vector<8x400xf32>
    %c0_3 = arith.constant 0 : index
    %c0_4 = arith.constant 0 : index
    %3 = vector.load %arg3[%c0_3, %c0_4] : memref<1x400xf32, #tpu.memory_space<vmem>>, vector<1x400xf32>
    %4 = vector.broadcast %3 : vector<1x400xf32> to vector<8x400xf32>
    %5 = arith.addf %2, %4 : vector<8x400xf32>
    %cst_5 = arith.constant 0.000000e+00 : f32
    %6 = vector.broadcast %cst_5 : f32 to vector<8x400xf32>
    %7 = arith.maximumf %5, %6 : vector<8x400xf32>
    %c0_6 = arith.constant 0 : index
    %c0_7 = arith.constant 0 : index
    %8 = vector.load %arg4[%c0_6, %c0_7] : memref<400x784xf32, #tpu.memory_space<vmem>>, vector<400x784xf32>
    %cst_8 = arith.constant dense<0.000000e+00> : vector<8x784xf32>
    %9 = tpu.matmul %7, %8, %cst_8 {dimension_numbers = #tpu.dot_dimension_numbers<[1], [0], [0], [1], [0, 0, 1, 1], [], []>} : vector<8x400xf32>, vector<400x784xf32>, vector<8x784xf32> -> vector<8x784xf32>
    %c0_9 = arith.constant 0 : index
    %c0_10 = arith.constant 0 : index
    %10 = vector.load %arg5[%c0_9, %c0_10] : memref<1x784xf32, #tpu.memory_space<vmem>>, vector<1x784xf32>
    %11 = vector.broadcast %10 : vector<1x784xf32> to vector<8x784xf32>
    %12 = arith.addf %9, %11 : vector<8x784xf32>
    %cst_11 = arith.constant 5.000000e-01 : f32
    %13 = vector.broadcast %cst_11 : f32 to vector<8x784xf32>
    %14 = arith.mulf %13, %12 : vector<8x784xf32>
    %15 = math.tanh %14 : vector<8x784xf32>
    %cst_12 = arith.constant 1.000000e+00 : f32
    %16 = vector.broadcast %cst_12 : f32 to vector<8x784xf32>
    %17 = arith.addf %15, %16 : vector<8x784xf32>
    %cst_13 = arith.constant 5.000000e-01 : f32
    %18 = vector.broadcast %cst_13 : f32 to vector<8x784xf32>
    %19 = arith.mulf %18, %17 : vector<8x784xf32>
    %c0_14 = arith.constant 0 : index
    %c0_15 = arith.constant 0 : index
    %20 = vector.load %arg6[%c0_14, %c0_15] : memref<8x784xf32, #tpu.memory_space<vmem>>, vector<8x784xf32>
    tpu.vector_store %arg6[%c0_14, %c0_15], %19 {strides = array<i32>} : memref<8x784xf32, #tpu.memory_space<vmem>>, vector<8x784xf32>,
    return
  }
  func.func @transform_0(%arg0: i32) -> (i32, i32) {
    %c0_i32 = arith.constant 0 : i32
    %c0_i32_0 = arith.constant 0 : i32
    return %arg0, %c0_i32 : i32, i32
  }
  func.func @transform_1(%arg0: i32) -> (i32, i32) {
    %c0_i32 = arith.constant 0 : i32
    %c0_i32_0 = arith.constant 0 : i32
    %c0_i32_1 = arith.constant 0 : i32
    return %c0_i32, %c0_i32_0 : i32, i32
  }
  func.func @transform_2(%arg0: i32) -> (i32, i32) {
    %c0_i32 = arith.constant 0 : i32
    %c0_i32_0 = arith.constant 0 : i32
    %c0_i32_1 = arith.constant 0 : i32
    return %c0_i32, %c0_i32_0 : i32, i32
  }
  func.func @transform_3(%arg0: i32) -> (i32, i32) {
    %c0_i32 = arith.constant 0 : i32
    %c0_i32_0 = arith.constant 0 : i32
    %c0_i32_1 = arith.constant 0 : i32
    return %c0_i32, %c0_i32_0 : i32, i32
  }
  func.func @transform_4(%arg0: i32) -> (i32, i32) {
    %c0_i32 = arith.constant 0 : i32
    %c0_i32_0 = arith.constant 0 : i32
    %c0_i32_1 = arith.constant 0 : i32
    return %c0_i32, %c0_i32_0 : i32, i32
  }
  func.func @transform_5(%arg0: i32) -> (i32, i32) {
    %c0_i32 = arith.constant 0 : i32
    %c0_i32_0 = arith.constant 0 : i32
    return %arg0, %c0_i32 : i32, i32
  }
}

</mosaic_0001>

<llo_original>
// kernel: tpu_custom_call.1
$region0: #{tpu_custom_call.1}
  #allocation0 [shape = 'u32[]', space=smem, size = 0x4, offset = 0x4, fixed_abs, tag = 'smem constant byte address 0x4 - core index']
  #allocation1 [shape = 'u32[144,128]{1,0:T(1,128)}', space=vmem, size = 0x12000, scoped, tag = 'internal scratch']
  %s0 = inlined_call_operand.hbm [shape: f32[8,20], index: 0, kind: input, shape index: {}]
  %s1 = inlined_call_operand.hbm [shape: f32[20,400], index: 1, kind: input, shape index: {}]
  %s2 = inlined_call_operand.hbm [shape: f32[1,400], index: 2, kind: input, shape index: {}]
  %s3 = inlined_call_operand.hbm [shape: f32[400,784], index: 3, kind: input, shape index: {}]
  %s4 = inlined_call_operand.hbm [shape: f32[1,784], index: 4, kind: input, shape index: {}]
  %s5 = inlined_call_operand.hbm [shape: f32[8,784], index: 5, kind: output, shape index: {}]
  %s6 = sld [smem:[#allocation0]]
  $region50: #{tpu_custom_call.1} parent=0
    _
  %s8 = ssub.s32 1, %s6
  %s9 = scalar_select 0, %s8, %s6
  $region1: #{tpu_custom_call.1} parent=0
    #allocation2 [shape = 'u8[4096]{0}', space=vmem, size = 0x1000, scoped, tag = 'input window, operand 0, single buffered']
    #allocation3 [shape = 's32[1]{0}', space=sflag, size = 0x4, scoped, tag = 'scoped memory for tpu_custom_call.1']
    #allocation4 [shape = 's32[1]{0}', space=sflag, size = 0x4, scoped, tag = 'scoped memory for tpu_custom_call.1']
    #allocation5 [shape = 'u8[49152]{0}', space=vmem, size = 0xc000, scoped, tag = 'input window, operand 1, single buffered']
    #allocation6 [shape = 's32[1]{0}', space=sflag, size = 0x4, scoped, tag = 'scoped memory for tpu_custom_call.1']
    #allocation7 [shape = 'u8[2048]{0}', space=vmem, size = 0x800, scoped, tag = 'input window, operand 2, single buffered']
    #allocation8 [shape = 'u8[1433600]{0}', space=vmem, size = 0x15e000, scoped, tag = 'input window, operand 3, single buffered']
    #allocation9 [shape = 's32[1]{0}', space=sflag, size = 0x4, scoped, tag = 'scoped memory for tpu_custom_call.1']
    #allocation10 [shape = 'u8[3584]{0}', space=vmem, size = 0x1000, scoped, tag = 'input window, operand 4, single buffered']
    #allocation11 [shape = 'u8[28672]{0}', space=vmem, size = 0x7000, scoped, tag = 'output window, operand 0, single buffered']
    %10 = vsyncpa [#allocation3], 0
    %11 = vsyncpa [#allocation6], 0
    %12 = vsyncpa [#allocation9], 0
    %13 = vsyncpa [#allocation4], 0
    // Predicated region
    $region2: #{tpu_custom_call.1} parent=1 // pred_check
      _
    $region3: #{tpu_custom_call.1} parent=1 // pred_check_branch
      %15 = sbr.rel (0) target = $region5
    $region4: #{tpu_custom_call.1} parent=1 // pred_region
      %s17 = ssub.s32 128, 128
      %18 = vsyncadd [#allocation3], %s17
      %s20 = sshll.u32 [#allocation2], 4
      %s21 = int_to_ptr.vmem [resolvable:$true] %s20
      %23 = dma.hbm_to_vmem [thread:$0]  %s0, 128, %s21, [#allocation3]
    $region5: #{tpu_custom_call.1} parent=1 // pred_fallthru
      _
    // Predicated region
    $region6: #{tpu_custom_call.1} parent=1 // pred_check
      _
    $region7: #{tpu_custom_call.1} parent=1 // pred_check_branch
      %25 = sbr.rel (0) target = $region9
    $region8: #{tpu_custom_call.1} parent=1 // pred_region
      %s27 = ssub.s32 1536, 1536
      %28 = vsyncadd [#allocation6], %s27
      %s29 = sshll.u32 [#allocation5], 4
      %s30 = int_to_ptr.vmem [resolvable:$true] %s29
      %35 = dma.hbm_to_vmem [thread:$0]  %s1, 1536, %s30, [#allocation6], 512, 512, 32
    $region9: #{tpu_custom_call.1} parent=1 // pred_fallthru
      _
    // Predicated region
    $region10: #{tpu_custom_call.1} parent=1 // pred_check
      _
    $region11: #{tpu_custom_call.1} parent=1 // pred_check_branch
      %37 = sbr.rel (0) target = $region13
    $region12: #{tpu_custom_call.1} parent=1 // pred_region
      %s39 = ssub.s32 64, 64
      %40 = vsyncadd [#allocation6], %s39
      %s42 = sshll.u32 [#allocation7], 4
      %s43 = int_to_ptr.vmem [resolvable:$true] %s42
      %45 = dma.hbm_to_vmem [thread:$0]  %s2, 64, %s43, [#allocation6]
    $region13: #{tpu_custom_call.1} parent=1 // pred_fallthru
      _
    // Predicated region
    $region14: #{tpu_custom_call.1} parent=1 // pred_check
      _
    $region15: #{tpu_custom_call.1} parent=1 // pred_check_branch
      %47 = sbr.rel (0) target = $region17
    $region16: #{tpu_custom_call.1} parent=1 // pred_region
      %s49 = ssub.s32 44800, 44800
      %50 = vsyncadd [#allocation9], %s49
      %s51 = sshll.u32 [#allocation8], 4
      %s52 = int_to_ptr.vmem [resolvable:$true] %s51
      %57 = dma.hbm_to_vmem [thread:$0]  %s3, 44800, %s52, [#allocation9], 896, 896, 56
    $region17: #{tpu_custom_call.1} parent=1 // pred_fallthru
      _
    // Predicated region
    $region18: #{tpu_custom_call.1} parent=1 // pred_check
      _
    $region19: #{tpu_custom_call.1} parent=1 // pred_check_branch
      %59 = sbr.rel (0) target = $region21
    $region20: #{tpu_custom_call.1} parent=1 // pred_region
      %s61 = ssub.s32 112, 112
      %62 = vsyncadd [#allocation9], %s61
      %s64 = sshll.u32 [#allocation10], 4
      %s65 = int_to_ptr.vmem [resolvable:$true] %s64
      %67 = dma.hbm_to_vmem [thread:$0]  %s4, 112, %s65, [#allocation9]
    $region21: #{tpu_custom_call.1} parent=1 // pred_fallthru
      _
    // Predicated region
    $region22: #{tpu_custom_call.1} parent=1 // pred_check
      _
    $region23: #{tpu_custom_call.1} parent=1 // pred_check_branch
      %69 = sbr.rel (0) target = $region25
    $region24: #{tpu_custom_call.1} parent=1 // pred_region
      %70 = dma.done [#allocation3], 128
    $region25: #{tpu_custom_call.1} parent=1 // pred_fallthru
      _
    // Predicated region
    $region26: #{tpu_custom_call.1} parent=1 // pred_check
      _
    $region27: #{tpu_custom_call.1} parent=1 // pred_check_branch
      %72 = sbr.rel (0) target = $region29
    $region28: #{tpu_custom_call.1} parent=1 // pred_region
      %73 = dma.done [#allocation6], 1536
    $region29: #{tpu_custom_call.1} parent=1 // pred_fallthru
      _
    // Predicated region
    $region30: #{tpu_custom_call.1} parent=1 // pred_check
      _
    $region31: #{tpu_custom_call.1} parent=1 // pred_check_branch
      %75 = sbr.rel (0) target = $region33
    $region32: #{tpu_custom_call.1} parent=1 // pred_region
      %76 = dma.done [#allocation6], 64
    $region33: #{tpu_custom_call.1} parent=1 // pred_fallthru
      _
    // Predicated region
    $region34: #{tpu_custom_call.1} parent=1 // pred_check
      _
    $region35: #{tpu_custom_call.1} parent=1 // pred_check_branch
      %78 = sbr.rel (0) target = $region37
    $region36: #{tpu_custom_call.1} parent=1 // pred_region
      %79 = dma.done [#allocation9], 44800
    $region37: #{tpu_custom_call.1} parent=1 // pred_fallthru
      _
    // Predicated region
    $region38: #{tpu_custom_call.1} parent=1 // pred_check
      _
    $region39: #{tpu_custom_call.1} parent=1 // pred_check_branch
      %81 = sbr.rel (0) target = $region41
    $region40: #{tpu_custom_call.1} parent=1 // pred_region
      %82 = dma.done [#allocation9], 112
    $region41: #{tpu_custom_call.1} parent=1 // pred_fallthru
      _
    %v83 = vld [vmem:[#allocation5] sm:$0xff]
    %v84 = vld [vmem:[#allocation5 + $0x8] sm:$0xff]
    %v85 = vld [vmem:[#allocation5 + $0x10] sm:$0xff]
    %v86 = vld [vmem:[#allocation5 + $0x18] sm:$0xff]
    %v87 = vld [vmem:[#allocation5 + $0x20] sm:$0xff]
    %v88 = vld [vmem:[#allocation5 + $0x28] sm:$0xff]
    %v89 = vld [vmem:[#allocation5 + $0x30] sm:$0xff]
    %v90 = vld [vmem:[#allocation5 + $0x38] sm:$0xff]
    %v91 = vld [vmem:[#allocation5 + $0x40] sm:$0xf]
    %v92 = vld [vmem:[#allocation5 + $0x48] sm:$0xf]
    %v93 = vld [vmem:[#allocation5 + $0x50] sm:$0xf]
    %v94 = vld [vmem:[#allocation5 + $0x58] sm:$0xf]
    %v95 = vld [vmem:[#allocation2] sm:$0xff]
    %v96 = vld [vmem:[#allocation7] sm:$0xf]
    %v98 = vlaneseq
    %v99 = vshrl.u32 %v98, 7
    %v100 = vsub.s32 0, %v99
    %v101 = vrot.slane %v96, %v100
    %v102 = vlaneseq
    %v103 = vshrl.u32 %v102, 7
    %v104 = vsub.s32 1, %v103
    %v105 = vrot.slane %v96, %v104
    %v106 = vlaneseq
    %v107 = vshrl.u32 %v106, 7
    %v108 = vsub.s32 2, %v107
    %v109 = vrot.slane %v96, %v108
    %v110 = vlaneseq
    %v111 = vshrl.u32 %v110, 7
    %v112 = vsub.s32 3, %v111
    %v113 = vrot.slane %v96, %v112
    %vm118 = vcmask 162816
    %v120 = vsel %vm118, %v95, 0
    %vm122 = vcmask 1043456
    %v124 = vsel %vm122, %v91, 0
    %v127 = vsel %vm122, %v92, 0
    %v130 = vsel %vm122, %v93, 0
    %v133 = vsel %vm122, %v94, 0
    %135 = vmatprep.subr.mxu0 0.0
    %136 = vmatpush1.msra.mxu0 0.0
    %137 = vmatprep.subr.mxu0 0.0
    %138 = vmatpush1.msra.mxu0 0.0
    %139 = vmatprep.subr.mxu0 0.0
    %140 = vmatpush1.msra.mxu0 0.0
    %141 = vmatprep.subr.mxu0 0.0
    %142 = vmatpush1.msra.mxu0 0.0
    %143 = vmatprep.subr.mxu0 0.0
    %144 = vmatpush1.msra.mxu0 0.0
    %145 = vmatprep.subr.mxu0 0.0
    %146 = vmatpush1.msra.mxu0 0.0
    %147 = vmatprep.subr.mxu0 0.0
    %148 = vmatpush1.msra.mxu0 0.0
    %149 = vmatprep.subr.mxu0 0.0
    %150 = vmatpush1.msra.mxu0 0.0
    %151 = vmatprep.subr.mxu0 0.0
    %152 = vmatpush1.msra.mxu0 0.0
    %153 = vmatprep.subr.mxu0 0.0
    %154 = vmatpush1.msra.mxu0 0.0
    %155 = vmatprep.subr.mxu0 0.0
    %156 = vmatpush1.msra.mxu0 0.0
    %157 = vmatprep.subr.mxu0 0.0
    %158 = vmatpush1.msra.mxu0 0.0
    %159 = vmatprep.subr.mxu0 0.0
    %160 = vmatpush1.msra.mxu0 0.0
    %161 = vmatprep.subr.mxu0 %v127
    %162 = vmatpush1.msra.mxu0 %v124
    %163 = vmatprep.subr.mxu0 %v88
    %164 = vmatpush1.msra.mxu0 %v87
    %165 = vmatprep.subr.mxu0 %v84
    %166 = vmatpush1.msra.mxu0 %v83
    %167 = vmatprep.subr.mxu0 0.0
    %168 = vmatpush2.msra.mxu0 0.0
    %169 = vmatprep.subr.mxu0 0.0
    %170 = vmatpush2.msra.mxu0 0.0
    %171 = vmatprep.subr.mxu0 0.0
    %172 = vmatpush2.msra.mxu0 0.0
    %173 = vmatprep.subr.mxu0 0.0
    %174 = vmatpush2.msra.mxu0 0.0
    %175 = vmatprep.subr.mxu0 0.0
    %176 = vmatpush2.msra.mxu0 0.0
    %177 = vmatprep.subr.mxu0 0.0
    %178 = vmatpush2.msra.mxu0 0.0
    %179 = vmatprep.subr.mxu0 0.0
    %180 = vmatpush2.msra.mxu0 0.0
    %181 = vmatprep.subr.mxu0 0.0
    %182 = vmatpush2.msra.mxu0 0.0
    %183 = vmatprep.subr.mxu0 0.0
    %184 = vmatpush2.msra.mxu0 0.0
    %185 = vmatprep.subr.mxu0 0.0
    %186 = vmatpush2.msra.mxu0 0.0
    %187 = vmatprep.subr.mxu0 0.0
    %188 = vmatpush2.msra.mxu0 0.0
    %189 = vmatprep.subr.mxu0 0.0
    %190 = vmatpush2.msra.mxu0 0.0
    %191 = vmatprep.subr.mxu0 0.0
    %192 = vmatpush2.msra.mxu0 0.0
    %193 = vmatprep.subr.mxu0 0.0
    %194 = vmatpush2.msra.mxu0 0.0
    %195 = vmatprep.subr.mxu0 0.0
    %196 = vmatpush2.msra.mxu0 0.0
    %197 = vmatprep.subr.mxu0 0.0
    %198 = vmatpush2.msra.mxu0 0.0
    %199 = vmatprep.mubr.f32.mxu0 0.0
    %200 = vmatmul.mubr.f32.gmra.mxu0 %v120
    %v201 = vpop.f32.mrf.mxu0
    %v202 = vadd.f32 %v101, %v201
    %v203 = vpop.f32.mrf.mxu0
    %v204 = vadd.f32 %v105, %v203
    %205 = vdwg.mxu0
    %206 = vmatprep.subr.mxu0 0.0
    %207 = vmatpush1.msra.mxu0 0.0
    %208 = vmatprep.subr.mxu0 0.0
    %209 = vmatpush1.msra.mxu0 0.0
    %210 = vmatprep.subr.mxu0 0.0
    %211 = vmatpush1.msra.mxu0 0.0
    %212 = vmatprep.subr.mxu0 0.0
    %213 = vmatpush1.msra.mxu0 0.0
    %214 = vmatprep.subr.mxu0 0.0
    %215 = vmatpush1.msra.mxu0 0.0
    %216 = vmatprep.subr.mxu0 0.0
    %217 = vmatpush1.msra.mxu0 0.0
    %218 = vmatprep.subr.mxu0 0.0
    %219 = vmatpush1.msra.mxu0 0.0
    %220 = vmatprep.subr.mxu0 0.0
    %221 = vmatpush1.msra.mxu0 0.0
    %222 = vmatprep.subr.mxu0 0.0
    %223 = vmatpush1.msra.mxu0 0.0
    %224 = vmatprep.subr.mxu0 0.0
    %225 = vmatpush1.msra.mxu0 0.0
    %226 = vmatprep.subr.mxu0 0.0
    %227 = vmatpush1.msra.mxu0 0.0
    %228 = vmatprep.subr.mxu0 0.0
    %229 = vmatpush1.msra.mxu0 0.0
    %230 = vmatprep.subr.mxu0 0.0
    %231 = vmatpush1.msra.mxu0 0.0
    %232 = vmatprep.subr.mxu0 %v133
    %233 = vmatpush1.msra.mxu0 %v130
    %234 = vmatprep.subr.mxu0 %v90
    %235 = vmatpush1.msra.mxu0 %v89
    %236 = vmatprep.subr.mxu0 %v86
    %237 = vmatpush1.msra.mxu0 %v85
    %238 = vmatprep.subr.mxu0 0.0
    %239 = vmatpush2.msra.mxu0 0.0
    %240 = vmatprep.subr.mxu0 0.0
    %241 = vmatpush2.msra.mxu0 0.0
    %242 = vmatprep.subr.mxu0 0.0
    %243 = vmatpush2.msra.mxu0 0.0
    %244 = vmatprep.subr.mxu0 0.0
    %245 = vmatpush2.msra.mxu0 0.0
    %246 = vmatprep.subr.mxu0 0.0
    %247 = vmatpush2.msra.mxu0 0.0
    %248 = vmatprep.subr.mxu0 0.0
    %249 = vmatpush2.msra.mxu0 0.0
    %250 = vmatprep.subr.mxu0 0.0
    %251 = vmatpush2.msra.mxu0 0.0
    %252 = vmatprep.subr.mxu0 0.0
    %253 = vmatpush2.msra.mxu0 0.0
    %254 = vmatprep.subr.mxu0 0.0
    %255 = vmatpush2.msra.mxu0 0.0
    %256 = vmatprep.subr.mxu0 0.0
    %257 = vmatpush2.msra.mxu0 0.0
    %258 = vmatprep.subr.mxu0 0.0
    %259 = vmatpush2.msra.mxu0 0.0
    %260 = vmatprep.subr.mxu0 0.0
    %261 = vmatpush2.msra.mxu0 0.0
    %262 = vmatprep.subr.mxu0 0.0
    %263 = vmatpush2.msra.mxu0 0.0
    %264 = vmatprep.subr.mxu0 0.0
    %265 = vmatpush2.msra.mxu0 0.0
    %266 = vmatprep.subr.mxu0 0.0
    %267 = vmatpush2.msra.mxu0 0.0
    %268 = vmatprep.subr.mxu0 0.0
    %269 = vmatpush2.msra.mxu0 0.0
    %270 = vmatprep.mubr.f32.mxu0 0.0
    %271 = vmatmul.mubr.f32.gmra.mxu0 %v120
    %v272 = vpop.f32.mrf.mxu0
    %v273 = vadd.f32 %v109, %v272
    %v274 = vpop.f32.mrf.mxu0
    %v275 = vadd.f32 %v113, %v274
    %276 = vdwg.mxu0
    %v277 = vmax.f32 %v202, 0.0
    %v278 = vmax.f32 %v204, 0.0
    %v279 = vmax.f32 %v273, 0.0
    %v280 = vmax.f32 %v275, 0.0
    %v281 = vld [vmem:[#allocation8] sm:$0xff]
    %v282 = vld [vmem:[#allocation8 + $0x8] sm:$0xff]
    %v283 = vld [vmem:[#allocation8 + $0x10] sm:$0xff]
    %v284 = vld [vmem:[#allocation8 + $0x18] sm:$0xff]
    %v285 = vld [vmem:[#allocation8 + $0x20] sm:$0xff]
    %v286 = vld [vmem:[#allocation8 + $0x28] sm:$0xff]
    %v287 = vld [vmem:[#allocation8 + $0x30] sm:$0xff]
    %v288 = vld [vmem:[#allocation8 + $0x38] sm:$0xff]
    %v289 = vld [vmem:[#allocation8 + $0x40] sm:$0xff]
    %v290 = vld [vmem:[#allocation8 + $0x48] sm:$0xff]
    %v291 = vld [vmem:[#allocation8 + $0x50] sm:$0xff]
    %v292 = vld [vmem:[#allocation8 + $0x58] sm:$0xff]
    %v293 = vld [vmem:[#allocation8 + $0x60] sm:$0xff]
    %v294 = vld [vmem:[#allocation8 + $0x68] sm:$0xff]
    %v295 = vld [vmem:[#allocation8 + $0x70] sm:$0xff]
    %v296 = vld [vmem:[#allocation8 + $0x78] sm:$0xff]
    %v297 = vld [vmem:[#allocation8 + $0x80] sm:$0xff]
    %v298 = vld [vmem:[#allocation8 + $0x88] sm:$0xff]
    %v299 = vld [vmem:[#allocation8 + $0x90] sm:$0xff]
    %v300 = vld [vmem:[#allocation8 + $0x98] sm:$0xff]
    %v301 = vld [vmem:[#allocation8 + $0xa0] sm:$0xff]
    %v302 = vld [vmem:[#allocation8 + $0xa8] sm:$0xff]
    %v303 = vld [vmem:[#allocation8 + $0xb0] sm:$0xff]
    %v304 = vld [vmem:[#allocation8 + $0xb8] sm:$0xff]
    %v305 = vld [vmem:[#allocation8 + $0xc0] sm:$0xff]
    %v306 = vld [vmem:[#allocation8 + $0xc8] sm:$0xff]
    %v307 = vld [vmem:[#allocation8 + $0xd0] sm:$0xff]
    %v308 = vld [vmem:[#allocation8 + $0xd8] sm:$0xff]
    %v309 = vld [vmem:[#allocation8 + $0xe0] sm:$0xff]
    %v310 = vld [vmem:[#allocation8 + $0xe8] sm:$0xff]
    %v311 = vld [vmem:[#allocation8 + $0xf0] sm:$0xff]
    %v312 = vld [vmem:[#allocation8 + $0xf8] sm:$0xff]
    %v313 = vld [vmem:[#allocation8 + $0x100] sm:$0xff]
    %v314 = vld [vmem:[#allocation8 + $0x108] sm:$0xff]
    %v315 = vld [vmem:[#allocation8 + $0x110] sm:$0xff]
    %v316 = vld [vmem:[#allocation8 + $0x118] sm:$0xff]
    %v317 = vld [vmem:[#allocation8 + $0x120] sm:$0xff]
    %v318 = vld [vmem:[#allocation8 + $0x128] sm:$0xff]
    %v319 = vld [vmem:[#allocation8 + $0x130] sm:$0xff]
    %v320 = vld [vmem:[#allocation8 + $0x138] sm:$0xff]
    %v321 = vld [vmem:[#allocation8 + $0x140] sm:$0xff]
    %v322 = vld [vmem:[#allocation8 + $0x148] sm:$0xff]
    %v323 = vld [vmem:[#allocation8 + $0x150] sm:$0xff]
    %v324 = vld [vmem:[#allocation8 + $0x158] sm:$0xff]
    %v325 = vld [vmem:[#allocation8 + $0x160] sm:$0xff]
    %v326 = vld [vmem:[#allocation8 + $0x168] sm:$0xff]
    %v327 = vld [vmem:[#allocation8 + $0x170] sm:$0xff]
    %v328 = vld [vmem:[#allocation8 + $0x178] sm:$0xff]
    %v329 = vld [vmem:[#allocation8 + $0x180] sm:$0xff]
    %v330 = vld [vmem:[#allocation8 + $0x188] sm:$0xff]
    %v331 = vld [vmem:[#allocation8 + $0x190] sm:$0xff]
    %v332 = vld [vmem:[#allocation8 + $0x198] sm:$0xff]
    %v333 = vld [vmem:[#allocation8 + $0x1a0] sm:$0xff]
    %v334 = vld [vmem:[#allocation8 + $0x1a8] sm:$0xff]
    %v335 = vld [vmem:[#allocation8 + $0x1b0] sm:$0xff]
    %v336 = vld [vmem:[#allocation8 + $0x1b8] sm:$0xff]
    %v337 = vld [vmem:[#allocation8 + $0x1c0] sm:$0xff]
    %v338 = vld [vmem:[#allocation8 + $0x1c8] sm:$0xff]
    %v339 = vld [vmem:[#allocation8 + $0x1d0] sm:$0xff]
    %v340 = vld [vmem:[#allocation8 + $0x1d8] sm:$0xff]
    %v341 = vld [vmem:[#allocation8 + $0x1e0] sm:$0xff]
    %v342 = vld [vmem:[#allocation8 + $0x1e8] sm:$0xff]
    %v343 = vld [vmem:[#allocation8 + $0x1f0] sm:$0xff]
    %v344 = vld [vmem:[#allocation8 + $0x1f8] sm:$0xff]
    %v345 = vld [vmem:[#allocation8 + $0x200] sm:$0xff]
    %v346 = vld [vmem:[#allocation8 + $0x208] sm:$0xff]
    %v347 = vld [vmem:[#allocation8 + $0x210] sm:$0xff]
    %v348 = vld [vmem:[#allocation8 + $0x218] sm:$0xff]
    %v349 = vld [vmem:[#allocation8 + $0x220] sm:$0xff]
    %v350 = vld [vmem:[#allocation8 + $0x228] sm:$0xff]
    %v351 = vld [vmem:[#allocation8 + $0x230] sm:$0xff]
    %v352 = vld [vmem:[#allocation8 + $0x238] sm:$0xff]
    %v353 = vld [vmem:[#allocation8 + $0x240] sm:$0xff]
    %v354 = vld [vmem:[#allocation8 + $0x248] sm:$0xff]
    %v355 = vld [vmem:[#allocation8 + $0x250] sm:$0xff]
    %v356 = vld [vmem:[#allocation8 + $0x258] sm:$0xff]
    %v357 = vld [vmem:[#allocation8 + $0x260] sm:$0xff]
    %v358 = vld [vmem:[#allocation8 + $0x268] sm:$0xff]
    %v359 = vld [vmem:[#allocation8 + $0x270] sm:$0xff]
    %v360 = vld [vmem:[#allocation8 + $0x278] sm:$0xff]
    %v361 = vld [vmem:[#allocation8 + $0x280] sm:$0xff]
    %v362 = vld [vmem:[#allocation8 + $0x288] sm:$0xff]
    %v363 = vld [vmem:[#allocation8 + $0x290] sm:$0xff]
    %v364 = vld [vmem:[#allocation8 + $0x298] sm:$0xff]
    %v365 = vld [vmem:[#allocation8 + $0x2a0] sm:$0xff]
    %v366 = vld [vmem:[#allocation8 + $0x2a8] sm:$0xff]
    %v367 = vld [vmem:[#allocation8 + $0x2b0] sm:$0xff]
    %v368 = vld [vmem:[#allocation8 + $0x2b8] sm:$0xff]
    %v369 = vld [vmem:[#allocation8 + $0x2c0] sm:$0xff]
    %v370 = vld [vmem:[#allocation8 + $0x2c8] sm:$0xff]
    %v371 = vld [vmem:[#allocation8 + $0x2d0] sm:$0xff]
    %v372 = vld [vmem:[#allocation8 + $0x2d8] sm:$0xff]
    %v373 = vld [vmem:[#allocation8 + $0x2e0] sm:$0xff]
    %v374 = vld [vmem:[#allocation8 + $0x2e8] sm:$0xff]
    %v375 = vld [vmem:[#allocation8 + $0x2f0] sm:$0xff]
    %v376 = vld [vmem:[#allocation8 + $0x2f8] sm:$0xff]
    %v377 = vld [vmem:[#allocation8 + $0x300] sm:$0xff]
    %v378 = vld [vmem:[#allocation8 + $0x308] sm:$0xff]
    %v379 = vld [vmem:[#allocation8 + $0x310] sm:$0xff]
    %v380 = vld [vmem:[#allocation8 + $0x318] sm:$0xff]
    %v381 = vld [vmem:[#allocation8 + $0x320] sm:$0xff]
    %v382 = vld [vmem:[#allocation8 + $0x328] sm:$0xff]
    %v383 = vld [vmem:[#allocation8 + $0x330] sm:$0xff]
    %v384 = vld [vmem:[#allocation8 + $0x338] sm:$0xff]
    %v385 = vld [vmem:[#allocation8 + $0x340] sm:$0xff]
    %v386 = vld [vmem:[#allocation8 + $0x348] sm:$0xff]
    %v387 = vld [vmem:[#allocation8 + $0x350] sm:$0xff]
    %v388 = vld [vmem:[#allocation8 + $0x358] sm:$0xff]
    %v389 = vld [vmem:[#allocation8 + $0x360] sm:$0xff]
    %v390 = vld [vmem:[#allocation8 + $0x368] sm:$0xff]
    %v391 = vld [vmem:[#allocation8 + $0x370] sm:$0xff]
    %v392 = vld [vmem:[#allocation8 + $0x378] sm:$0xff]
    %v393 = vld [vmem:[#allocation8 + $0x380] sm:$0xff]
    %v394 = vld [vmem:[#allocation8 + $0x388] sm:$0xff]
    %v395 = vld [vmem:[#allocation8 + $0x390] sm:$0xff]
    %v396 = vld [vmem:[#allocation8 + $0x398] sm:$0xff]
    %v397 = vld [vmem:[#allocation8 + $0x3a0] sm:$0xff]
    %v398 = vld [vmem:[#allocation8 + $0x3a8] sm:$0xff]
    %v399 = vld [vmem:[#allocation8 + $0x3b0] sm:$0xff]
    %v400 = vld [vmem:[#allocation8 + $0x3b8] sm:$0xff]
    %v401 = vld [vmem:[#allocation8 + $0x3c0] sm:$0xff]
    %v402 = vld [vmem:[#allocation8 + $0x3c8] sm:$0xff]
    %v403 = vld [vmem:[#allocation8 + $0x3d0] sm:$0xff]
    %v404 = vld [vmem:[#allocation8 + $0x3d8] sm:$0xff]
    %v405 = vld [vmem:[#allocation8 + $0x3e0] sm:$0xff]
    %v406 = vld [vmem:[#allocation8 + $0x3e8] sm:$0xff]
    %v407 = vld [vmem:[#allocation8 + $0x3f0] sm:$0xff]
    %v408 = vld [vmem:[#allocation8 + $0x3f8] sm:$0xff]
    %v409 = vld [vmem:[#allocation8 + $0x400] sm:$0xff]
    %v410 = vld [vmem:[#allocation8 + $0x408] sm:$0xff]
    %v411 = vld [vmem:[#allocation8 + $0x410] sm:$0xff]
    %v412 = vld [vmem:[#allocation8 + $0x418] sm:$0xff]
    %v413 = vld [vmem:[#allocation8 + $0x420] sm:$0xff]
    %v414 = vld [vmem:[#allocation8 + $0x428] sm:$0xff]
    %v415 = vld [vmem:[#allocation8 + $0x430] sm:$0xff]
    %v416 = vld [vmem:[#allocation8 + $0x438] sm:$0xff]
    %v417 = vld [vmem:[#allocation8 + $0x440] sm:$0xff]
    %v418 = vld [vmem:[#allocation8 + $0x448] sm:$0xff]
    %v419 = vld [vmem:[#allocation8 + $0x450] sm:$0xff]
    %v420 = vld [vmem:[#allocation8 + $0x458] sm:$0xff]
    %v421 = vld [vmem:[#allocation8 + $0x460] sm:$0xff]
    %v422 = vld [vmem:[#allocation8 + $0x468] sm:$0xff]
    %v423 = vld [vmem:[#allocation8 + $0x470] sm:$0xff]
    %v424 = vld [vmem:[#allocation8 + $0x478] sm:$0xff]
    %v425 = vld [vmem:[#allocation8 + $0x480] sm:$0xff]
    %v426 = vld [vmem:[#allocation8 + $0x488] sm:$0xff]
    %v427 = vld [vmem:[#allocation8 + $0x490] sm:$0xff]
    %v428 = vld [vmem:[#allocation8 + $0x498] sm:$0xff]
    %v429 = vld [vmem:[#allocation8 + $0x4a0] sm:$0xff]
    %v430 = vld [vmem:[#allocation8 + $0x4a8] sm:$0xff]
    %v431 = vld [vmem:[#allocation8 + $0x4b0] sm:$0xff]
    %v432 = vld [vmem:[#allocation8 + $0x4b8] sm:$0xff]
    %v433 = vld [vmem:[#allocation8 + $0x4c0] sm:$0xff]
    %v434 = vld [vmem:[#allocation8 + $0x4c8] sm:$0xff]
    %v435 = vld [vmem:[#allocation8 + $0x4d0] sm:$0xff]
    %v436 = vld [vmem:[#allocation8 + $0x4d8] sm:$0xff]
    %v437 = vld [vmem:[#allocation8 + $0x4e0] sm:$0xff]
    %v438 = vld [vmem:[#allocation8 + $0x4e8] sm:$0xff]
    %v439 = vld [vmem:[#allocation8 + $0x4f0] sm:$0xff]
    %v440 = vld [vmem:[#allocation8 + $0x4f8] sm:$0xff]
    %v441 = vld [vmem:[#allocation8 + $0x500] sm:$0xff]
    %v442 = vld [vmem:[#allocation8 + $0x508] sm:$0xff]
    %v443 = vld [vmem:[#allocation8 + $0x510] sm:$0xff]
    %v444 = vld [vmem:[#allocation8 + $0x518] sm:$0xff]
    %v445 = vld [vmem:[#allocation8 + $0x520] sm:$0xff]
    %v446 = vld [vmem:[#allocation8 + $0x528] sm:$0xff]
    %v447 = vld [vmem:[#allocation8 + $0x530] sm:$0xff]
    %v448 = vld [vmem:[#allocation8 + $0x538] sm:$0xff]
    %v449 = vld [vmem:[#allocation8 + $0x540] sm:$0xff]
    %v450 = vld [vmem:[#allocation8 + $0x548] sm:$0xff]
    %v451 = vld [vmem:[#allocation8 + $0x550] sm:$0xff]
    %v452 = vld [vmem:[#allocation8 + $0x558] sm:$0xff]
    %v453 = vld [vmem:[#allocation8 + $0x560] sm:$0xff]
    %v454 = vld [vmem:[#allocation8 + $0x568] sm:$0xff]
    %v455 = vld [vmem:[#allocation8 + $0x570] sm:$0xff]
    %v456 = vld [vmem:[#allocation8 + $0x578] sm:$0xff]
    %v457 = vld [vmem:[#allocation8 + $0x580] sm:$0xff]
    %v458 = vld [vmem:[#allocation8 + $0x588] sm:$0xff]
    %v459 = vld [vmem:[#allocation8 + $0x590] sm:$0xff]
    %v460 = vld [vmem:[#allocation8 + $0x598] sm:$0xff]
    %v461 = vld [vmem:[#allocation8 + $0x5a0] sm:$0xff]
    %v462 = vld [vmem:[#allocation8 + $0x5a8] sm:$0xff]
    %v463 = vld [vmem:[#allocation8 + $0x5b0] sm:$0xff]
    %v464 = vld [vmem:[#allocation8 + $0x5b8] sm:$0xff]
    %v465 = vld [vmem:[#allocation8 + $0x5c0] sm:$0xff]
    %v466 = vld [vmem:[#allocation8 + $0x5c8] sm:$0xff]
    %v467 = vld [vmem:[#allocation8 + $0x5d0] sm:$0xff]
    %v468 = vld [vmem:[#allocation8 + $0x5d8] sm:$0xff]
    %v469 = vld [vmem:[#allocation8 + $0x5e0] sm:$0xff]
    %v470 = vld [vmem:[#allocation8 + $0x5e8] sm:$0xff]
    %v471 = vld [vmem:[#allocation8 + $0x5f0] sm:$0xff]
    %v472 = vld [vmem:[#allocation8 + $0x5f8] sm:$0xff]
    %v473 = vld [vmem:[#allocation8 + $0x600] sm:$0xff]
    %v474 = vld [vmem:[#allocation8 + $0x608] sm:$0xff]
    %v475 = vld [vmem:[#allocation8 + $0x610] sm:$0xff]
    %v476 = vld [vmem:[#allocation8 + $0x618] sm:$0xff]
    %v477 = vld [vmem:[#allocation8 + $0x620] sm:$0xff]
    %v478 = vld [vmem:[#allocation8 + $0x628] sm:$0xff]
    %v479 = vld [vmem:[#allocation8 + $0x630] sm:$0xff]
    %v480 = vld [vmem:[#allocation8 + $0x638] sm:$0xff]
    %v481 = vld [vmem:[#allocation8 + $0x640] sm:$0xff]
    %v482 = vld [vmem:[#allocation8 + $0x648] sm:$0xff]
    %v483 = vld [vmem:[#allocation8 + $0x650] sm:$0xff]
    %v484 = vld [vmem:[#allocation8 + $0x658] sm:$0xff]
    %v485 = vld [vmem:[#allocation8 + $0x660] sm:$0xff]
    %v486 = vld [vmem:[#allocation8 + $0x668] sm:$0xff]
    %v487 = vld [vmem:[#allocation8 + $0x670] sm:$0xff]
    %v488 = vld [vmem:[#allocation8 + $0x678] sm:$0xff]
    %v489 = vld [vmem:[#allocation8 + $0x680] sm:$0xff]
    %v490 = vld [vmem:[#allocation8 + $0x688] sm:$0xff]
    %v491 = vld [vmem:[#allocation8 + $0x690] sm:$0xff]
    %v492 = vld [vmem:[#allocation8 + $0x698] sm:$0xff]
    %v493 = vld [vmem:[#allocation8 + $0x6a0] sm:$0xff]
    %v494 = vld [vmem:[#allocation8 + $0x6a8] sm:$0xff]
    %v495 = vld [vmem:[#allocation8 + $0x6b0] sm:$0xff]
    %v496 = vld [vmem:[#allocation8 + $0x6b8] sm:$0xff]
    %v497 = vld [vmem:[#allocation8 + $0x6c0] sm:$0xff]
    %v498 = vld [vmem:[#allocation8 + $0x6c8] sm:$0xff]
    %v499 = vld [vmem:[#allocation8 + $0x6d0] sm:$0xff]
    %v500 = vld [vmem:[#allocation8 + $0x6d8] sm:$0xff]
    %v501 = vld [vmem:[#allocation8 + $0x6e0] sm:$0xff]
    %v502 = vld [vmem:[#allocation8 + $0x6e8] sm:$0xff]
    %v503 = vld [vmem:[#allocation8 + $0x6f0] sm:$0xff]
    %v504 = vld [vmem:[#allocation8 + $0x6f8] sm:$0xff]
    %v505 = vld [vmem:[#allocation8 + $0x700] sm:$0xff]
    %v506 = vld [vmem:[#allocation8 + $0x708] sm:$0xff]
    %v507 = vld [vmem:[#allocation8 + $0x710] sm:$0xff]
    %v508 = vld [vmem:[#allocation8 + $0x718] sm:$0xff]
    %v509 = vld [vmem:[#allocation8 + $0x720] sm:$0xff]
    %v510 = vld [vmem:[#allocation8 + $0x728] sm:$0xff]
    %v511 = vld [vmem:[#allocation8 + $0x730] sm:$0xff]
    %v512 = vld [vmem:[#allocation8 + $0x738] sm:$0xff]
    %v513 = vld [vmem:[#allocation8 + $0x740] sm:$0xff]
    %v514 = vld [vmem:[#allocation8 + $0x748] sm:$0xff]
    %v515 = vld [vmem:[#allocation8 + $0x750] sm:$0xff]
    %v516 = vld [vmem:[#allocation8 + $0x758] sm:$0xff]
    %v517 = vld [vmem:[#allocation8 + $0x760] sm:$0xff]
    %v518 = vld [vmem:[#allocation8 + $0x768] sm:$0xff]
    %v519 = vld [vmem:[#allocation8 + $0x770] sm:$0xff]
    %v520 = vld [vmem:[#allocation8 + $0x778] sm:$0xff]
    %v521 = vld [vmem:[#allocation8 + $0x780] sm:$0xff]
    %v522 = vld [vmem:[#allocation8 + $0x788] sm:$0xff]
    %v523 = vld [vmem:[#allocation8 + $0x790] sm:$0xff]
    %v524 = vld [vmem:[#allocation8 + $0x798] sm:$0xff]
    %v525 = vld [vmem:[#allocation8 + $0x7a0] sm:$0xff]
    %v526 = vld [vmem:[#allocation8 + $0x7a8] sm:$0xff]
    %v527 = vld [vmem:[#allocation8 + $0x7b0] sm:$0xff]
    %v528 = vld [vmem:[#allocation8 + $0x7b8] sm:$0xff]
    %v529 = vld [vmem:[#allocation8 + $0x7c0] sm:$0xff]
    %v530 = vld [vmem:[#allocation8 + $0x7c8] sm:$0xff]
    %v531 = vld [vmem:[#allocation8 + $0x7d0] sm:$0xff]
    %v532 = vld [vmem:[#allocation8 + $0x7d8] sm:$0xff]
    %v533 = vld [vmem:[#allocation8 + $0x7e0] sm:$0xff]
    %v534 = vld [vmem:[#allocation8 + $0x7e8] sm:$0xff]
    %v535 = vld [vmem:[#allocation8 + $0x7f0] sm:$0xff]
    %v536 = vld [vmem:[#allocation8 + $0x7f8] sm:$0xff]
    %v537 = vld [vmem:[#allocation8 + $0x800] sm:$0xff]
    %v538 = vld [vmem:[#allocation8 + $0x808] sm:$0xff]
    %v539 = vld [vmem:[#allocation8 + $0x810] sm:$0xff]
    %v540 = vld [vmem:[#allocation8 + $0x818] sm:$0xff]
    %v541 = vld [vmem:[#allocation8 + $0x820] sm:$0xff]
    %v542 = vld [vmem:[#allocation8 + $0x828] sm:$0xff]
    %v543 = vld [vmem:[#allocation8 + $0x830] sm:$0xff]
    %v544 = vld [vmem:[#allocation8 + $0x838] sm:$0xff]
    %v545 = vld [vmem:[#allocation8 + $0x840] sm:$0xff]
    %v546 = vld [vmem:[#allocation8 + $0x848] sm:$0xff]
    %v547 = vld [vmem:[#allocation8 + $0x850] sm:$0xff]
    %v548 = vld [vmem:[#allocation8 + $0x858] sm:$0xff]
    %v549 = vld [vmem:[#allocation8 + $0x860] sm:$0xff]
    %v550 = vld [vmem:[#allocation8 + $0x868] sm:$0xff]
    %v551 = vld [vmem:[#allocation8 + $0x870] sm:$0xff]
    %v552 = vld [vmem:[#allocation8 + $0x878] sm:$0xff]
    %v553 = vld [vmem:[#allocation8 + $0x880] sm:$0xff]
    %v554 = vld [vmem:[#allocation8 + $0x888] sm:$0xff]
    %v555 = vld [vmem:[#allocation8 + $0x890] sm:$0xff]
    %v556 = vld [vmem:[#allocation8 + $0x898] sm:$0xff]
    %v557 = vld [vmem:[#allocation8 + $0x8a0] sm:$0xff]
    %v558 = vld [vmem:[#allocation8 + $0x8a8] sm:$0xff]
    %v559 = vld [vmem:[#allocation8 + $0x8b0] sm:$0xff]
    %v560 = vld [vmem:[#allocation8 + $0x8b8] sm:$0xff]
    %v561 = vld [vmem:[#allocation8 + $0x8c0] sm:$0xff]
    %v562 = vld [vmem:[#allocation8 + $0x8c8] sm:$0xff]
    %v563 = vld [vmem:[#allocation8 + $0x8d0] sm:$0xff]
    %v564 = vld [vmem:[#allocation8 + $0x8d8] sm:$0xff]
    %v565 = vld [vmem:[#allocation8 + $0x8e0] sm:$0xff]
    %v566 = vld [vmem:[#allocation8 + $0x8e8] sm:$0xff]
    %v567 = vld [vmem:[#allocation8 + $0x8f0] sm:$0xff]
    %v568 = vld [vmem:[#allocation8 + $0x8f8] sm:$0xff]
    %v569 = vld [vmem:[#allocation8 + $0x900] sm:$0xff]
    %v570 = vld [vmem:[#allocation8 + $0x908] sm:$0xff]
    %v571 = vld [vmem:[#allocation8 + $0x910] sm:$0xff]
    %v572 = vld [vmem:[#allocation8 + $0x918] sm:$0xff]
    %v573 = vld [vmem:[#allocation8 + $0x920] sm:$0xff]
    %v574 = vld [vmem:[#allocation8 + $0x928] sm:$0xff]
    %v575 = vld [vmem:[#allocation8 + $0x930] sm:$0xff]
    %v576 = vld [vmem:[#allocation8 + $0x938] sm:$0xff]
    %v577 = vld [vmem:[#allocation8 + $0x940] sm:$0xff]
    %v578 = vld [vmem:[#allocation8 + $0x948] sm:$0xff]
    %v579 = vld [vmem:[#allocation8 + $0x950] sm:$0xff]
    %v580 = vld [vmem:[#allocation8 + $0x958] sm:$0xff]
    %v581 = vld [vmem:[#allocation8 + $0x960] sm:$0xff]
    %v582 = vld [vmem:[#allocation8 + $0x968] sm:$0xff]
    %v583 = vld [vmem:[#allocation8 + $0x970] sm:$0xff]
    %v584 = vld [vmem:[#allocation8 + $0x978] sm:$0xff]
    %v585 = vld [vmem:[#allocation8 + $0x980] sm:$0xff]
    %v586 = vld [vmem:[#allocation8 + $0x988] sm:$0xff]
    %v587 = vld [vmem:[#allocation8 + $0x990] sm:$0xff]
    %v588 = vld [vmem:[#allocation8 + $0x998] sm:$0xff]
    %v589 = vld [vmem:[#allocation8 + $0x9a0] sm:$0xff]
    %v590 = vld [vmem:[#allocation8 + $0x9a8] sm:$0xff]
    %v591 = vld [vmem:[#allocation8 + $0x9b0] sm:$0xff]
    %v592 = vld [vmem:[#allocation8 + $0x9b8] sm:$0xff]
    %v593 = vld [vmem:[#allocation8 + $0x9c0] sm:$0xff]
    %v594 = vld [vmem:[#allocation8 + $0x9c8] sm:$0xff]
    %v595 = vld [vmem:[#allocation8 + $0x9d0] sm:$0xff]
    %v596 = vld [vmem:[#allocation8 + $0x9d8] sm:$0xff]
    %v597 = vld [vmem:[#allocation8 + $0x9e0] sm:$0xff]
    %v598 = vld [vmem:[#allocation8 + $0x9e8] sm:$0xff]
    %v599 = vld [vmem:[#allocation8 + $0x9f0] sm:$0xff]
    %v600 = vld [vmem:[#allocation8 + $0x9f8] sm:$0xff]
    %v601 = vld [vmem:[#allocation8 + $0xa00] sm:$0xff]
    %v602 = vld [vmem:[#allocation8 + $0xa08] sm:$0xff]
    %v603 = vld [vmem:[#allocation8 + $0xa10] sm:$0xff]
    %v604 = vld [vmem:[#allocation8 + $0xa18] sm:$0xff]
    %v605 = vld [vmem:[#allocation8 + $0xa20] sm:$0xff]
    %v606 = vld [vmem:[#allocation8 + $0xa28] sm:$0xff]
    %v607 = vld [vmem:[#allocation8 + $0xa30] sm:$0xff]
    %v608 = vld [vmem:[#allocation8 + $0xa38] sm:$0xff]
    %v609 = vld [vmem:[#allocation8 + $0xa40] sm:$0xff]
    %v610 = vld [vmem:[#allocation8 + $0xa48] sm:$0xff]
    %v611 = vld [vmem:[#allocation8 + $0xa50] sm:$0xff]
    %v612 = vld [vmem:[#allocation8 + $0xa58] sm:$0xff]
    %v613 = vld [vmem:[#allocation8 + $0xa60] sm:$0xff]
    %v614 = vld [vmem:[#allocation8 + $0xa68] sm:$0xff]
    %v615 = vld [vmem:[#allocation8 + $0xa70] sm:$0xff]
    %v616 = vld [vmem:[#allocation8 + $0xa78] sm:$0xff]
    %v617 = vld [vmem:[#allocation8 + $0xa80] sm:$0xff]
    %v618 = vld [vmem:[#allocation8 + $0xa88] sm:$0xff]
    %v619 = vld [vmem:[#allocation8 + $0xa90] sm:$0xff]
    %v620 = vld [vmem:[#allocation8 + $0xa98] sm:$0xff]
    %v621 = vld [vmem:[#allocation8 + $0xaa0] sm:$0xff]
    %v622 = vld [vmem:[#allocation8 + $0xaa8] sm:$0xff]
    %v623 = vld [vmem:[#allocation8 + $0xab0] sm:$0xff]
    %v624 = vld [vmem:[#allocation8 + $0xab8] sm:$0xff]
    %v625 = vld [vmem:[#allocation8 + $0xac0] sm:$0xff]
    %v626 = vld [vmem:[#allocation8 + $0xac8] sm:$0xff]
    %v627 = vld [vmem:[#allocation8 + $0xad0] sm:$0xff]
    %v628 = vld [vmem:[#allocation8 + $0xad8] sm:$0xff]
    %v629 = vld [vmem:[#allocation8 + $0xae0] sm:$0xff]
    %v630 = vld [vmem:[#allocation8 + $0xae8] sm:$0xff]
    %v631 = vld [vmem:[#allocation10] sm:$0x7f]
    %v633 = vlaneseq
    %v634 = vshrl.u32 %v633, 7
    %v635 = vsub.s32 0, %v634
    %v636 = vrot.slane %v631, %v635
    %v637 = vlaneseq
    %v638 = vshrl.u32 %v637, 7
    %v639 = vsub.s32 1, %v638
    %v640 = vrot.slane %v631, %v639
    %v641 = vlaneseq
    %v642 = vshrl.u32 %v641, 7
    %v643 = vsub.s32 2, %v642
    %v644 = vrot.slane %v631, %v643
    %v645 = vlaneseq
    %v646 = vshrl.u32 %v645, 7
    %v647 = vsub.s32 3, %v646
    %v648 = vrot.slane %v631, %v647
    %v649 = vlaneseq
    %v650 = vshrl.u32 %v649, 7
    %v651 = vsub.s32 4, %v650
    %v652 = vrot.slane %v631, %v651
    %v653 = vlaneseq
    %v654 = vshrl.u32 %v653, 7
    %v655 = vsub.s32 5, %v654
    %v656 = vrot.slane %v631, %v655
    %v657 = vlaneseq
    %v658 = vshrl.u32 %v657, 7
    %v659 = vsub.s32 6, %v658
    %v660 = vrot.slane %v631, %v659
    %vm668 = vcmask 130048
    %v670 = vsel %vm668, %v280, 0
    %672 = vmatprep.subr.mxu0 %v387
    %673 = vmatpush1.msra.mxu0 %v386
    %674 = vmatprep.subr.mxu0 %v380
    %675 = vmatpush1.msra.mxu0 %v379
    %676 = vmatprep.subr.mxu0 %v373
    %677 = vmatpush1.msra.mxu0 %v372
    %678 = vmatprep.subr.mxu0 %v366
    %679 = vmatpush1.msra.mxu0 %v365
    %680 = vmatprep.subr.mxu0 %v359
    %681 = vmatpush1.msra.mxu0 %v358
    %682 = vmatprep.subr.mxu0 %v352
    %683 = vmatpush1.msra.mxu0 %v351
    %684 = vmatprep.subr.mxu0 %v345
    %685 = vmatpush1.msra.mxu0 %v344
    %686 = vmatprep.subr.mxu0 %v338
    %687 = vmatpush1.msra.mxu0 %v337
    %688 = vmatprep.subr.mxu0 %v331
    %689 = vmatpush1.msra.mxu0 %v330
    %690 = vmatprep.subr.mxu0 %v324
    %691 = vmatpush1.msra.mxu0 %v323
    %692 = vmatprep.subr.mxu0 %v317
    %693 = vmatpush1.msra.mxu0 %v316
    %694 = vmatprep.subr.mxu0 %v310
    %695 = vmatpush1.msra.mxu0 %v309
    %696 = vmatprep.subr.mxu0 %v303
    %697 = vmatpush1.msra.mxu0 %v302
    %698 = vmatprep.subr.mxu0 %v296
    %699 = vmatpush1.msra.mxu0 %v295
    %700 = vmatprep.subr.mxu0 %v289
    %701 = vmatpush1.msra.mxu0 %v288
    %702 = vmatprep.subr.mxu0 %v282
    %703 = vmatpush1.msra.mxu0 %v281
    %704 = vmatprep.subr.mxu0 %v499
    %705 = vmatpush2.msra.mxu0 %v498
    %706 = vmatprep.subr.mxu0 %v492
    %707 = vmatpush2.msra.mxu0 %v491
    %708 = vmatprep.subr.mxu0 %v485
    %709 = vmatpush2.msra.mxu0 %v484
    %710 = vmatprep.subr.mxu0 %v478
    %711 = vmatpush2.msra.mxu0 %v477
    %712 = vmatprep.subr.mxu0 %v471
    %713 = vmatpush2.msra.mxu0 %v470
    %714 = vmatprep.subr.mxu0 %v464
    %715 = vmatpush2.msra.mxu0 %v463
    %716 = vmatprep.subr.mxu0 %v457
    %717 = vmatpush2.msra.mxu0 %v456
    %718 = vmatprep.subr.mxu0 %v450
    %719 = vmatpush2.msra.mxu0 %v449
    %720 = vmatprep.subr.mxu0 %v443
    %721 = vmatpush2.msra.mxu0 %v442
    %722 = vmatprep.subr.mxu0 %v436
    %723 = vmatpush2.msra.mxu0 %v435
    %724 = vmatprep.subr.mxu0 %v429
    %725 = vmatpush2.msra.mxu0 %v428
    %726 = vmatprep.subr.mxu0 %v422
    %727 = vmatpush2.msra.mxu0 %v421
    %728 = vmatprep.subr.mxu0 %v415
    %729 = vmatpush2.msra.mxu0 %v414
    %730 = vmatprep.subr.mxu0 %v408
    %731 = vmatpush2.msra.mxu0 %v407
    %732 = vmatprep.subr.mxu0 %v401
    %733 = vmatpush2.msra.mxu0 %v400
    %734 = vmatprep.subr.mxu0 %v394
    %735 = vmatpush2.msra.mxu0 %v393
    %736 = vmatprep.mubr.f32.mxu0 %v278
    %737 = vmatmul.mubr.f32.gmra.mxu0 %v277
    %v738 = vpop.f32.mrf.mxu0
    %v739 = vadd.f32 %v636, %v738
    %v740 = vpop.f32.mrf.mxu0
    %v741 = vadd.f32 %v640, %v740
    %742 = vdwg.mxu0
    %743 = vmatprep.subr.mxu0 %v611
    %744 = vmatpush1.msra.mxu0 %v610
    %745 = vmatprep.subr.mxu0 %v604
    %746 = vmatpush1.msra.mxu0 %v603
    %747 = vmatprep.subr.mxu0 %v597
    %748 = vmatpush1.msra.mxu0 %v596
    %749 = vmatprep.subr.mxu0 %v590
    %750 = vmatpush1.msra.mxu0 %v589
    %751 = vmatprep.subr.mxu0 %v583
    %752 = vmatpush1.msra.mxu0 %v582
    %753 = vmatprep.subr.mxu0 %v576
    %754 = vmatpush1.msra.mxu0 %v575
    %755 = vmatprep.subr.mxu0 %v569
    %756 = vmatpush1.msra.mxu0 %v568
    %757 = vmatprep.subr.mxu0 %v562
    %758 = vmatpush1.msra.mxu0 %v561
    %759 = vmatprep.subr.mxu0 %v555
    %760 = vmatpush1.msra.mxu0 %v554
    %761 = vmatprep.subr.mxu0 %v548
    %762 = vmatpush1.msra.mxu0 %v547
    %763 = vmatprep.subr.mxu0 %v541
    %764 = vmatpush1.msra.mxu0 %v540
    %765 = vmatprep.subr.mxu0 %v534
    %766 = vmatpush1.msra.mxu0 %v533
    %767 = vmatprep.subr.mxu0 %v527
    %768 = vmatpush1.msra.mxu0 %v526
    %769 = vmatprep.subr.mxu0 %v520
    %770 = vmatpush1.msra.mxu0 %v519
    %771 = vmatprep.subr.mxu0 %v513
    %772 = vmatpush1.msra.mxu0 %v512
    %773 = vmatprep.subr.mxu0 %v506
    %774 = vmatpush1.msra.mxu0 %v505
    %775 = vmatprep.subr.mxu0 0.0
    %776 = vmatpush2.msra.mxu0 0.0
    %777 = vmatprep.subr.mxu0 0.0
    %778 = vmatpush2.msra.mxu0 0.0
    %779 = vmatprep.subr.mxu0 0.0
    %780 = vmatpush2.msra.mxu0 0.0
    %781 = vmatprep.subr.mxu0 0.0
    %782 = vmatpush2.msra.mxu0 0.0
    %783 = vmatprep.subr.mxu0 0.0
    %784 = vmatpush2.msra.mxu0 0.0
    %785 = vmatprep.subr.mxu0 0.0
    %786 = vmatpush2.msra.mxu0 0.0
    %787 = vmatprep.subr.mxu0 0.0
    %788 = vmatpush2.msra.mxu0 0.0
    %789 = vmatprep.subr.mxu0 0.0
    %790 = vmatpush2.msra.mxu0 0.0
    %791 = vmatprep.subr.mxu0 0.0
    %792 = vmatpush2.msra.mxu0 0.0
    %793 = vmatprep.subr.mxu0 0.0
    %794 = vmatpush2.msra.mxu0 0.0
    %795 = vmatprep.subr.mxu0 0.0
    %796 = vmatpush2.msra.mxu0 0.0
    %797 = vmatprep.subr.mxu0 0.0
    %798 = vmatpush2.msra.mxu0 0.0
    %799 = vmatprep.subr.mxu0 0.0
    %800 = vmatpush2.msra.mxu0 0.0
    %801 = vmatprep.subr.mxu0 0.0
    %802 = vmatpush2.msra.mxu0 0.0
    %803 = vmatprep.subr.mxu0 %v625
    %804 = vmatpush2.msra.mxu0 %v624
    %805 = vmatprep.subr.mxu0 %v618
    %806 = vmatpush2.msra.mxu0 %v617
    %807 = vmatprep.mubr.f32.mxu0 %v670
    %808 = vmatmul.mubr.f32.gmra.mxu0 %v279
    %v809 = vpop.f32.mrf.mxu0
    %v810 = vadd.f32 %v739, %v809
    %v811 = vpop.f32.mrf.mxu0
    %v812 = vadd.f32 %v741, %v811
    %813 = vdwg.mxu0
    %814 = vmatprep.subr.mxu0 %v389
    %815 = vmatpush1.msra.mxu0 %v388
    %816 = vmatprep.subr.mxu0 %v382
    %817 = vmatpush1.msra.mxu0 %v381
    %818 = vmatprep.subr.mxu0 %v375
    %819 = vmatpush1.msra.mxu0 %v374
    %820 = vmatprep.subr.mxu0 %v368
    %821 = vmatpush1.msra.mxu0 %v367
    %822 = vmatprep.subr.mxu0 %v361
    %823 = vmatpush1.msra.mxu0 %v360
    %824 = vmatprep.subr.mxu0 %v354
    %825 = vmatpush1.msra.mxu0 %v353
    %826 = vmatprep.subr.mxu0 %v347
    %827 = vmatpush1.msra.mxu0 %v346
    %828 = vmatprep.subr.mxu0 %v340
    %829 = vmatpush1.msra.mxu0 %v339
    %830 = vmatprep.subr.mxu0 %v333
    %831 = vmatpush1.msra.mxu0 %v332
    %832 = vmatprep.subr.mxu0 %v326
    %833 = vmatpush1.msra.mxu0 %v325
    %834 = vmatprep.subr.mxu0 %v319
    %835 = vmatpush1.msra.mxu0 %v318
    %836 = vmatprep.subr.mxu0 %v312
    %837 = vmatpush1.msra.mxu0 %v311
    %838 = vmatprep.subr.mxu0 %v305
    %839 = vmatpush1.msra.mxu0 %v304
    %840 = vmatprep.subr.mxu0 %v298
    %841 = vmatpush1.msra.mxu0 %v297
    %842 = vmatprep.subr.mxu0 %v291
    %843 = vmatpush1.msra.mxu0 %v290
    %844 = vmatprep.subr.mxu0 %v284
    %845 = vmatpush1.msra.mxu0 %v283
    %846 = vmatprep.subr.mxu0 %v501
    %847 = vmatpush2.msra.mxu0 %v500
    %848 = vmatprep.subr.mxu0 %v494
    %849 = vmatpush2.msra.mxu0 %v493
    %850 = vmatprep.subr.mxu0 %v487
    %851 = vmatpush2.msra.mxu0 %v486
    %852 = vmatprep.subr.mxu0 %v480
    %853 = vmatpush2.msra.mxu0 %v479
    %854 = vmatprep.subr.mxu0 %v473
    %855 = vmatpush2.msra.mxu0 %v472
    %856 = vmatprep.subr.mxu0 %v466
    %857 = vmatpush2.msra.mxu0 %v465
    %858 = vmatprep.subr.mxu0 %v459
    %859 = vmatpush2.msra.mxu0 %v458
    %860 = vmatprep.subr.mxu0 %v452
    %861 = vmatpush2.msra.mxu0 %v451
    %862 = vmatprep.subr.mxu0 %v445
    %863 = vmatpush2.msra.mxu0 %v444
    %864 = vmatprep.subr.mxu0 %v438
    %865 = vmatpush2.msra.mxu0 %v437
    %866 = vmatprep.subr.mxu0 %v431
    %867 = vmatpush2.msra.mxu0 %v430
    %868 = vmatprep.subr.mxu0 %v424
    %869 = vmatpush2.msra.mxu0 %v423
    %870 = vmatprep.subr.mxu0 %v417
    %871 = vmatpush2.msra.mxu0 %v416
    %872 = vmatprep.subr.mxu0 %v410
    %873 = vmatpush2.msra.mxu0 %v409
    %874 = vmatprep.subr.mxu0 %v403
    %875 = vmatpush2.msra.mxu0 %v402
    %876 = vmatprep.subr.mxu0 %v396
    %877 = vmatpush2.msra.mxu0 %v395
    %878 = vmatprep.mubr.f32.mxu0 %v278
    %879 = vmatmul.mubr.f32.gmra.mxu0 %v277
    %v880 = vpop.f32.mrf.mxu0
    %v881 = vadd.f32 %v644, %v880
    %v882 = vpop.f32.mrf.mxu0
    %v883 = vadd.f32 %v648, %v882
    %884 = vdwg.mxu0
    %885 = vmatprep.subr.mxu0 %v613
    %886 = vmatpush1.msra.mxu0 %v612
    %887 = vmatprep.subr.mxu0 %v606
    %888 = vmatpush1.msra.mxu0 %v605
    %889 = vmatprep.subr.mxu0 %v599
    %890 = vmatpush1.msra.mxu0 %v598
    %891 = vmatprep.subr.mxu0 %v592
    %892 = vmatpush1.msra.mxu0 %v591
    %893 = vmatprep.subr.mxu0 %v585
    %894 = vmatpush1.msra.mxu0 %v584
    %895 = vmatprep.subr.mxu0 %v578
    %896 = vmatpush1.msra.mxu0 %v577
    %897 = vmatprep.subr.mxu0 %v571
    %898 = vmatpush1.msra.mxu0 %v570
    %899 = vmatprep.subr.mxu0 %v564
    %900 = vmatpush1.msra.mxu0 %v563
    %901 = vmatprep.subr.mxu0 %v557
    %902 = vmatpush1.msra.mxu0 %v556
    %903 = vmatprep.subr.mxu0 %v550
    %904 = vmatpush1.msra.mxu0 %v549
    %905 = vmatprep.subr.mxu0 %v543
    %906 = vmatpush1.msra.mxu0 %v542
    %907 = vmatprep.subr.mxu0 %v536
    %908 = vmatpush1.msra.mxu0 %v535
    %909 = vmatprep.subr.mxu0 %v529
    %910 = vmatpush1.msra.mxu0 %v528
    %911 = vmatprep.subr.mxu0 %v522
    %912 = vmatpush1.msra.mxu0 %v521
    %913 = vmatprep.subr.mxu0 %v515
    %914 = vmatpush1.msra.mxu0 %v514
    %915 = vmatprep.subr.mxu0 %v508
    %916 = vmatpush1.msra.mxu0 %v507
    %917 = vmatprep.subr.mxu0 0.0
    %918 = vmatpush2.msra.mxu0 0.0
    %919 = vmatprep.subr.mxu0 0.0
    %920 = vmatpush2.msra.mxu0 0.0
    %921 = vmatprep.subr.mxu0 0.0
    %922 = vmatpush2.msra.mxu0 0.0
    %923 = vmatprep.subr.mxu0 0.0
    %924 = vmatpush2.msra.mxu0 0.0
    %925 = vmatprep.subr.mxu0 0.0
    %926 = vmatpush2.msra.mxu0 0.0
    %927 = vmatprep.subr.mxu0 0.0
    %928 = vmatpush2.msra.mxu0 0.0
    %929 = vmatprep.subr.mxu0 0.0
    %930 = vmatpush2.msra.mxu0 0.0
    %931 = vmatprep.subr.mxu0 0.0
    %932 = vmatpush2.msra.mxu0 0.0
    %933 = vmatprep.subr.mxu0 0.0
    %934 = vmatpush2.msra.mxu0 0.0
    %935 = vmatprep.subr.mxu0 0.0
    %936 = vmatpush2.msra.mxu0 0.0
    %937 = vmatprep.subr.mxu0 0.0
    %938 = vmatpush2.msra.mxu0 0.0
    %939 = vmatprep.subr.mxu0 0.0
    %940 = vmatpush2.msra.mxu0 0.0
    %941 = vmatprep.subr.mxu0 0.0
    %942 = vmatpush2.msra.mxu0 0.0
    %943 = vmatprep.subr.mxu0 0.0
    %944 = vmatpush2.msra.mxu0 0.0
    %945 = vmatprep.subr.mxu0 %v627
    %946 = vmatpush2.msra.mxu0 %v626
    %947 = vmatprep.subr.mxu0 %v620
    %948 = vmatpush2.msra.mxu0 %v619
    %949 = vmatprep.mubr.f32.mxu0 %v670
    %950 = vmatmul.mubr.f32.gmra.mxu0 %v279
    %v951 = vpop.f32.mrf.mxu0
    %v952 = vadd.f32 %v881, %v951
    %v953 = vpop.f32.mrf.mxu0
    %v954 = vadd.f32 %v883, %v953
    %955 = vdwg.mxu0
    %956 = vmatprep.subr.mxu0 %v391
    %957 = vmatpush1.msra.mxu0 %v390
    %958 = vmatprep.subr.mxu0 %v384
    %959 = vmatpush1.msra.mxu0 %v383
    %960 = vmatprep.subr.mxu0 %v377
    %961 = vmatpush1.msra.mxu0 %v376
    %962 = vmatprep.subr.mxu0 %v370
    %963 = vmatpush1.msra.mxu0 %v369
    %964 = vmatprep.subr.mxu0 %v363
    %965 = vmatpush1.msra.mxu0 %v362
    %966 = vmatprep.subr.mxu0 %v356
    %967 = vmatpush1.msra.mxu0 %v355
    %968 = vmatprep.subr.mxu0 %v349
    %969 = vmatpush1.msra.mxu0 %v348
    %970 = vmatprep.subr.mxu0 %v342
    %971 = vmatpush1.msra.mxu0 %v341
    %972 = vmatprep.subr.mxu0 %v335
    %973 = vmatpush1.msra.mxu0 %v334
    %974 = vmatprep.subr.mxu0 %v328
    %975 = vmatpush1.msra.mxu0 %v327
    %976 = vmatprep.subr.mxu0 %v321
    %977 = vmatpush1.msra.mxu0 %v320
    %978 = vmatprep.subr.mxu0 %v314
    %979 = vmatpush1.msra.mxu0 %v313
    %980 = vmatprep.subr.mxu0 %v307
    %981 = vmatpush1.msra.mxu0 %v306
    %982 = vmatprep.subr.mxu0 %v300
    %983 = vmatpush1.msra.mxu0 %v299
    %984 = vmatprep.subr.mxu0 %v293
    %985 = vmatpush1.msra.mxu0 %v292
    %986 = vmatprep.subr.mxu0 %v286
    %987 = vmatpush1.msra.mxu0 %v285
    %988 = vmatprep.subr.mxu0 %v503
    %989 = vmatpush2.msra.mxu0 %v502
    %990 = vmatprep.subr.mxu0 %v496
    %991 = vmatpush2.msra.mxu0 %v495
    %992 = vmatprep.subr.mxu0 %v489
    %993 = vmatpush2.msra.mxu0 %v488
    %994 = vmatprep.subr.mxu0 %v482
    %995 = vmatpush2.msra.mxu0 %v481
    %996 = vmatprep.subr.mxu0 %v475
    %997 = vmatpush2.msra.mxu0 %v474
    %998 = vmatprep.subr.mxu0 %v468
    %999 = vmatpush2.msra.mxu0 %v467
    %1000 = vmatprep.subr.mxu0 %v461
    %1001 = vmatpush2.msra.mxu0 %v460
    %1002 = vmatprep.subr.mxu0 %v454
    %1003 = vmatpush2.msra.mxu0 %v453
    %1004 = vmatprep.subr.mxu0 %v447
    %1005 = vmatpush2.msra.mxu0 %v446
    %1006 = vmatprep.subr.mxu0 %v440
    %1007 = vmatpush2.msra.mxu0 %v439
    %1008 = vmatprep.subr.mxu0 %v433
    %1009 = vmatpush2.msra.mxu0 %v432
    %1010 = vmatprep.subr.mxu0 %v426
    %1011 = vmatpush2.msra.mxu0 %v425
    %1012 = vmatprep.subr.mxu0 %v419
    %1013 = vmatpush2.msra.mxu0 %v418
    %1014 = vmatprep.subr.mxu0 %v412
    %1015 = vmatpush2.msra.mxu0 %v411
    %1016 = vmatprep.subr.mxu0 %v405
    %1017 = vmatpush2.msra.mxu0 %v404
    %1018 = vmatprep.subr.mxu0 %v398
    %1019 = vmatpush2.msra.mxu0 %v397
    %1020 = vmatprep.mubr.f32.mxu0 %v278
    %1021 = vmatmul.mubr.f32.gmra.mxu0 %v277
    %v1022 = vpop.f32.mrf.mxu0
    %v1023 = vadd.f32 %v652, %v1022
    %v1024 = vpop.f32.mrf.mxu0
    %v1025 = vadd.f32 %v656, %v1024
    %1026 = vdwg.mxu0
    %1027 = vmatprep.subr.mxu0 %v615
    %1028 = vmatpush1.msra.mxu0 %v614
    %1029 = vmatprep.subr.mxu0 %v608
    %1030 = vmatpush1.msra.mxu0 %v607
    %1031 = vmatprep.subr.mxu0 %v601
    %1032 = vmatpush1.msra.mxu0 %v600
    %1033 = vmatprep.subr.mxu0 %v594
    %1034 = vmatpush1.msra.mxu0 %v593
    %1035 = vmatprep.subr.mxu0 %v587
    %1036 = vmatpush1.msra.mxu0 %v586
    %1037 = vmatprep.subr.mxu0 %v580
    %1038 = vmatpush1.msra.mxu0 %v579
    %1039 = vmatprep.subr.mxu0 %v573
    %1040 = vmatpush1.msra.mxu0 %v572
    %1041 = vmatprep.subr.mxu0 %v566
    %1042 = vmatpush1.msra.mxu0 %v565
    %1043 = vmatprep.subr.mxu0 %v559
    %1044 = vmatpush1.msra.mxu0 %v558
    %1045 = vmatprep.subr.mxu0 %v552
    %1046 = vmatpush1.msra.mxu0 %v551
    %1047 = vmatprep.subr.mxu0 %v545
    %1048 = vmatpush1.msra.mxu0 %v544
    %1049 = vmatprep.subr.mxu0 %v538
    %1050 = vmatpush1.msra.mxu0 %v537
    %1051 = vmatprep.subr.mxu0 %v531
    %1052 = vmatpush1.msra.mxu0 %v530
    %1053 = vmatprep.subr.mxu0 %v524
    %1054 = vmatpush1.msra.mxu0 %v523
    %1055 = vmatprep.subr.mxu0 %v517
    %1056 = vmatpush1.msra.mxu0 %v516
    %1057 = vmatprep.subr.mxu0 %v510
    %1058 = vmatpush1.msra.mxu0 %v509
    %1059 = vmatprep.subr.mxu0 0.0
    %1060 = vmatpush2.msra.mxu0 0.0
    %1061 = vmatprep.subr.mxu0 0.0
    %1062 = vmatpush2.msra.mxu0 0.0
    %1063 = vmatprep.subr.mxu0 0.0
    %1064 = vmatpush2.msra.mxu0 0.0
    %1065 = vmatprep.subr.mxu0 0.0
    %1066 = vmatpush2.msra.mxu0 0.0
    %1067 = vmatprep.subr.mxu0 0.0
    %1068 = vmatpush2.msra.mxu0 0.0
    %1069 = vmatprep.subr.mxu0 0.0
    %1070 = vmatpush2.msra.mxu0 0.0
    %1071 = vmatprep.subr.mxu0 0.0
    %1072 = vmatpush2.msra.mxu0 0.0
    %1073 = vmatprep.subr.mxu0 0.0
    %1074 = vmatpush2.msra.mxu0 0.0
    %1075 = vmatprep.subr.mxu0 0.0
    %1076 = vmatpush2.msra.mxu0 0.0
    %1077 = vmatprep.subr.mxu0 0.0
    %1078 = vmatpush2.msra.mxu0 0.0
    %1079 = vmatprep.subr.mxu0 0.0
    %1080 = vmatpush2.msra.mxu0 0.0
    %1081 = vmatprep.subr.mxu0 0.0
    %1082 = vmatpush2.msra.mxu0 0.0
    %1083 = vmatprep.subr.mxu0 0.0
    %1084 = vmatpush2.msra.mxu0 0.0
    %1085 = vmatprep.subr.mxu0 0.0
    %1086 = vmatpush2.msra.mxu0 0.0
    %1087 = vmatprep.subr.mxu0 %v629
    %1088 = vmatpush2.msra.mxu0 %v628
    %1089 = vmatprep.subr.mxu0 %v622
    %1090 = vmatpush2.msra.mxu0 %v621
    %1091 = vmatprep.mubr.f32.mxu0 %v670
    %1092 = vmatmul.mubr.f32.gmra.mxu0 %v279
    %v1093 = vpop.f32.mrf.mxu0
    %v1094 = vadd.f32 %v1023, %v1093
    %v1095 = vpop.f32.mrf.mxu0
    %v1096 = vadd.f32 %v1025, %v1095
    %1097 = vdwg.mxu0
    %1098 = vmatprep.subr.mxu0 0.0
    %1099 = vmatpush1.msra.mxu0 %v392
    %1100 = vmatprep.subr.mxu0 0.0
    %1101 = vmatpush1.msra.mxu0 %v385
    %1102 = vmatprep.subr.mxu0 0.0
    %1103 = vmatpush1.msra.mxu0 %v378
    %1104 = vmatprep.subr.mxu0 0.0
    %1105 = vmatpush1.msra.mxu0 %v371
    %1106 = vmatprep.subr.mxu0 0.0
    %1107 = vmatpush1.msra.mxu0 %v364
    %1108 = vmatprep.subr.mxu0 0.0
    %1109 = vmatpush1.msra.mxu0 %v357
    %1110 = vmatprep.subr.mxu0 0.0
    %1111 = vmatpush1.msra.mxu0 %v350
    %1112 = vmatprep.subr.mxu0 0.0
    %1113 = vmatpush1.msra.mxu0 %v343
    %1114 = vmatprep.subr.mxu0 0.0
    %1115 = vmatpush1.msra.mxu0 %v336
    %1116 = vmatprep.subr.mxu0 0.0
    %1117 = vmatpush1.msra.mxu0 %v329
    %1118 = vmatprep.subr.mxu0 0.0
    %1119 = vmatpush1.msra.mxu0 %v322
    %1120 = vmatprep.subr.mxu0 0.0
    %1121 = vmatpush1.msra.mxu0 %v315
    %1122 = vmatprep.subr.mxu0 0.0
    %1123 = vmatpush1.msra.mxu0 %v308
    %1124 = vmatprep.subr.mxu0 0.0
    %1125 = vmatpush1.msra.mxu0 %v301
    %1126 = vmatprep.subr.mxu0 0.0
    %1127 = vmatpush1.msra.mxu0 %v294
    %1128 = vmatprep.subr.mxu0 0.0
    %1129 = vmatpush1.msra.mxu0 %v287
    %1130 = vmatprep.subr.mxu0 0.0
    %1131 = vmatpush2.msra.mxu0 %v504
    %1132 = vmatprep.subr.mxu0 0.0
    %1133 = vmatpush2.msra.mxu0 %v497
    %1134 = vmatprep.subr.mxu0 0.0
    %1135 = vmatpush2.msra.mxu0 %v490
    %1136 = vmatprep.subr.mxu0 0.0
    %1137 = vmatpush2.msra.mxu0 %v483
    %1138 = vmatprep.subr.mxu0 0.0
    %1139 = vmatpush2.msra.mxu0 %v476
    %1140 = vmatprep.subr.mxu0 0.0
    %1141 = vmatpush2.msra.mxu0 %v469
    %1142 = vmatprep.subr.mxu0 0.0
    %1143 = vmatpush2.msra.mxu0 %v462
    %1144 = vmatprep.subr.mxu0 0.0
    %1145 = vmatpush2.msra.mxu0 %v455
    %1146 = vmatprep.subr.mxu0 0.0
    %1147 = vmatpush2.msra.mxu0 %v448
    %1148 = vmatprep.subr.mxu0 0.0
    %1149 = vmatpush2.msra.mxu0 %v441
    %1150 = vmatprep.subr.mxu0 0.0
    %1151 = vmatpush2.msra.mxu0 %v434
    %1152 = vmatprep.subr.mxu0 0.0
    %1153 = vmatpush2.msra.mxu0 %v427
    %1154 = vmatprep.subr.mxu0 0.0
    %1155 = vmatpush2.msra.mxu0 %v420
    %1156 = vmatprep.subr.mxu0 0.0
    %1157 = vmatpush2.msra.mxu0 %v413
    %1158 = vmatprep.subr.mxu0 0.0
    %1159 = vmatpush2.msra.mxu0 %v406
    %1160 = vmatprep.subr.mxu0 0.0
    %1161 = vmatpush2.msra.mxu0 %v399
    %1162 = vmatprep.mubr.f32.mxu0 %v278
    %1163 = vmatmul.mubr.f32.gmra.mxu0 %v277
    %v1164 = vpop.f32.mrf.mxu0
    %v1165 = vadd.f32 %v660, %v1164
    %v1166 = vpop.f32.mrf.mxu0
    %1167 = vdwg.mxu0
    %1168 = vmatprep.subr.mxu0 0.0
    %1169 = vmatpush1.msra.mxu0 %v616
    %1170 = vmatprep.subr.mxu0 0.0
    %1171 = vmatpush1.msra.mxu0 %v609
    %1172 = vmatprep.subr.mxu0 0.0
    %1173 = vmatpush1.msra.mxu0 %v602
    %1174 = vmatprep.subr.mxu0 0.0
    %1175 = vmatpush1.msra.mxu0 %v595
    %1176 = vmatprep.subr.mxu0 0.0
    %1177 = vmatpush1.msra.mxu0 %v588
    %1178 = vmatprep.subr.mxu0 0.0
    %1179 = vmatpush1.msra.mxu0 %v581
    %1180 = vmatprep.subr.mxu0 0.0
    %1181 = vmatpush1.msra.mxu0 %v574
    %1182 = vmatprep.subr.mxu0 0.0
    %1183 = vmatpush1.msra.mxu0 %v567
    %1184 = vmatprep.subr.mxu0 0.0
    %1185 = vmatpush1.msra.mxu0 %v560
    %1186 = vmatprep.subr.mxu0 0.0
    %1187 = vmatpush1.msra.mxu0 %v553
    %1188 = vmatprep.subr.mxu0 0.0
    %1189 = vmatpush1.msra.mxu0 %v546
    %1190 = vmatprep.subr.mxu0 0.0
    %1191 = vmatpush1.msra.mxu0 %v539
    %1192 = vmatprep.subr.mxu0 0.0
    %1193 = vmatpush1.msra.mxu0 %v532
    %1194 = vmatprep.subr.mxu0 0.0
    %1195 = vmatpush1.msra.mxu0 %v525
    %1196 = vmatprep.subr.mxu0 0.0
    %1197 = vmatpush1.msra.mxu0 %v518
    %1198 = vmatprep.subr.mxu0 0.0
    %1199 = vmatpush1.msra.mxu0 %v511
    %1200 = vmatprep.subr.mxu0 0.0
    %1201 = vmatpush2.msra.mxu0 0.0
    %1202 = vmatprep.subr.mxu0 0.0
    %1203 = vmatpush2.msra.mxu0 0.0
    %1204 = vmatprep.subr.mxu0 0.0
    %1205 = vmatpush2.msra.mxu0 0.0
    %1206 = vmatprep.subr.mxu0 0.0
    %1207 = vmatpush2.msra.mxu0 0.0
    %1208 = vmatprep.subr.mxu0 0.0
    %1209 = vmatpush2.msra.mxu0 0.0
    %1210 = vmatprep.subr.mxu0 0.0
    %1211 = vmatpush2.msra.mxu0 0.0
    %1212 = vmatprep.subr.mxu0 0.0
    %1213 = vmatpush2.msra.mxu0 0.0
    %1214 = vmatprep.subr.mxu0 0.0
    %1215 = vmatpush2.msra.mxu0 0.0
    %1216 = vmatprep.subr.mxu0 0.0
    %1217 = vmatpush2.msra.mxu0 0.0
    %1218 = vmatprep.subr.mxu0 0.0
    %1219 = vmatpush2.msra.mxu0 0.0
    %1220 = vmatprep.subr.mxu0 0.0
    %1221 = vmatpush2.msra.mxu0 0.0
    %1222 = vmatprep.subr.mxu0 0.0
    %1223 = vmatpush2.msra.mxu0 0.0
    %1224 = vmatprep.subr.mxu0 0.0
    %1225 = vmatpush2.msra.mxu0 0.0
    %1226 = vmatprep.subr.mxu0 0.0
    %1227 = vmatpush2.msra.mxu0 0.0
    %1228 = vmatprep.subr.mxu0 0.0
    %1229 = vmatpush2.msra.mxu0 %v630
    %1230 = vmatprep.subr.mxu0 0.0
    %1231 = vmatpush2.msra.mxu0 %v623
    %1232 = vmatprep.mubr.f32.mxu0 %v670
    %1233 = vmatmul.mubr.f32.gmra.mxu0 %v279
    %v1234 = vpop.f32.mrf.mxu0
    %v1235 = vadd.f32 %v1165, %v1234
    %v1236 = vpop.f32.mrf.mxu0
    %1237 = vdwg.mxu0
    %v1238 = vmul.f32 %v810, 0.5
    %v1239 = vmul.f32 %v812, 0.5
    %v1240 = vmul.f32 %v952, 0.5
    %v1241 = vmul.f32 %v954, 0.5
    %v1242 = vmul.f32 %v1094, 0.5
    %v1243 = vmul.f32 %v1096, 0.5
    %v1244 = vmul.f32 %v1235, 0.5
    %v1245 = vtanh.pop %v1238
    %v1246 = vtanh.pop %v1239
    %v1247 = vtanh.pop %v1240
    %v1248 = vtanh.pop %v1241
    %v1249 = vtanh.pop %v1242
    %v1250 = vtanh.pop %v1243
    %v1251 = vtanh.pop %v1244
    %v1252 = vadd.f32 %v1245, 1.0
    %v1253 = vadd.f32 %v1246, 1.0
    %v1254 = vadd.f32 %v1247, 1.0
    %v1255 = vadd.f32 %v1248, 1.0
    %v1256 = vadd.f32 %v1249, 1.0
    %v1257 = vadd.f32 %v1250, 1.0
    %v1258 = vadd.f32 %v1251, 1.0
    %v1259 = vmul.f32 %v1252, 0.5
    %v1260 = vmul.f32 %v1253, 0.5
    %v1261 = vmul.f32 %v1254, 0.5
    %v1262 = vmul.f32 %v1255, 0.5
    %v1263 = vmul.f32 %v1256, 0.5
    %v1264 = vmul.f32 %v1257, 0.5
    %v1265 = vmul.f32 %v1258, 0.5
    %1266 = vst [vmem:[#allocation11] sm:$0xff] %v1259
    %1267 = vst [vmem:[#allocation11 + $0x8] sm:$0xff] %v1260
    %1268 = vst [vmem:[#allocation11 + $0x10] sm:$0xff] %v1261
    %1269 = vst [vmem:[#allocation11 + $0x18] sm:$0xff] %v1262
    %1270 = vst [vmem:[#allocation11 + $0x20] sm:$0xff] %v1263
    %1271 = vst [vmem:[#allocation11 + $0x28] sm:$0xff] %v1264
    %1272 = vst.msk [vmem:[#allocation11 + $0x30] sm:$0xff] %vm668, %v1265
    // Predicated region
    $region42: #{tpu_custom_call.1} parent=1 // pred_check
      _
    $region43: #{tpu_custom_call.1} parent=1 // pred_check_branch
      %1274 = sbr.rel (0) target = $region45
    $region44: #{tpu_custom_call.1} parent=1 // pred_region
      %s1276 = ssub.s32 896, 896
      %1277 = vsyncadd [#allocation4], %s1276
      %s1279 = sshll.u32 [#allocation11], 4
      %s1280 = int_to_ptr.vmem [resolvable:$true] %s1279
      %1282 = dma.vmem_to_hbm [thread:$0]  %s1280, 896, %s5, [#allocation4]
    $region45: #{tpu_custom_call.1} parent=1 // pred_fallthru
      _
    // Predicated region
    $region46: #{tpu_custom_call.1} parent=1 // pred_check
      _
    $region47: #{tpu_custom_call.1} parent=1 // pred_check_branch
      %1284 = sbr.rel (0) target = $region49
    $region48: #{tpu_custom_call.1} parent=1 // pred_region
      %1285 = dma.done [#allocation4], 896
    $region49: #{tpu_custom_call.1} parent=1 // pred_fallthru
      _
    %1286 = vsyncpa [#allocation3], 1
    %1287 = vsyncpa [#allocation6], 1
    %1288 = vsyncpa [#allocation9], 1
    %1289 = vsyncpa [#allocation4], 1

</llo_original>
